<compile_context>
chip_gen: v7x
topology: tpu7x:2x2x1
jax: 0.10.0
libtpu: 0.0.40
codegen_flags: <defaults>
</compile_context>

<pallas_src>
import functools
import math

import numpy as np

import jax
import jax.numpy as jnp
from jax import lax
from jax.experimental import pallas as pl
from jax.experimental.pallas import tpu as pltpu

LN_EPS = 1e-6
_LANES_TARGET = 8192     # ~1 MiB f32 output block / grid step (amortizes the
                         # ~0.35us per-grid-step pipeline overhead)


def _stem_kernel(x_ref, w_ref, m_ref, g_ref, b_ref, o_ref, *, Cin, H, W, N):
    """One grid step = one (batch, depth-tile).

    x_ref : (1, Cin, EXT) bf16   haloed, lane-padded, depth-flattened input
                                 tile; lane = (depth-in-tile, h, w) flattened
    w_ref : (Cout, 27*Cin) bf16  conv weights, columns ordered (kd, kh, kw, ci)
    m_ref : (9, N) bf16          per-(kh, kw) spatial validity masks
    g_ref, b_ref : (Cout, 1) f32 LayerNorm gamma / beta (per-channel)
    o_ref : (1, Cout, N)         channels-on-sublanes, voxels-on-lanes output
    """
    HW = H * W
    PAD = W + 1
    f32 = jnp.float32

    # ---- im2col via 27 shifted lane reads of the single haloed slab.
    # Every read is (Cin, N) with N lane-dense; out-of-window (h,w) lanes are
    # zeroed by the precomputed masks (the depth halo handles kd).  No masked
    # narrow stores, no per-tap reshapes.
    taps = []
    for kd in range(3):
        for kh in range(3):
            for kw in range(3):
                base = PAD + kd * HW + (kh - 1) * W + (kw - 1)
                piece = x_ref[0, :, base:base + N]             # (Cin, N) bf16
                if kh == 1 and kw == 1:
                    taps.append(piece)                          # mask is all-ones
                else:
                    mi = kh * 3 + kw
                    taps.append(piece * m_ref[mi:mi + 1, :])
    patch = jnp.concatenate(taps, axis=0)                       # (27*Cin, N) bf16

    # ---- Conv3d: ONE bf16 MXU matmul, f32 accumulation.
    acc = jnp.dot(w_ref[...], patch,
                  preferred_element_type=f32)                   # (Cout, N) f32

    # ---- channels_first LayerNorm: per-voxel stats over the sublane
    # (channel) axis; biased variance, matching the PyTorch reference.
    mean = jnp.mean(acc, axis=0, keepdims=True)                 # (1, N)
    cen = acc - mean
    var = jnp.mean(cen * cen, axis=0, keepdims=True)
    y = cen * lax.rsqrt(var + LN_EPS) * g_ref[...] + b_ref[...]

    # Single lane-dense store; no lane packing to undo afterwards.
    o_ref[0] = y.astype(o_ref.dtype)


@functools.partial(jax.jit, static_argnames=("compute_dtype",))
def stem_layer_forward(x, conv_weight, ln_weight, ln_bias, *,
                       compute_dtype=jnp.bfloat16):
    """StemLayer forward.

    x           : (B, Cin, D, H, W)    NCDHW, float32
    conv_weight : (Cout, Cin, 3, 3, 3) PyTorch Conv3d layout (OIDHW)
    ln_weight   : (Cout,)
    ln_bias     : (Cout,)
    returns     : (B, Cout, D, H, W)   float32
    """
    B, Cin, D, H, W = x.shape
    Cout = conv_weight.shape[0]
    K = 27 * Cin
    HW = H * W

    # ---- depth tiling: td output depth slices per grid step.
    g = 128 // math.gcd(HW, 128)            # granule so td*HW % 128 == 0
    td = min(max(1, _LANES_TARGET // HW), D)
    if td < D:
        td = max(g, (td // g) * g)          # lane-aligned output blocks
        if td >= D:
            td = D
    # v7x has 2 TensorCores: keep >= 2 grid steps when possible.
    if B == 1 and td == D and D >= 2 * g:
        td = ((pl.cdiv(D, 2) + g - 1) // g) * g
    nd = pl.cdiv(D, td)
    Dt = nd * td                            # zero-padded depth (tail handled)
    N = td * HW                             # lanes (output voxels) per step
    # TODO(synk): very large H*W (N >> _LANES_TARGET even at td=1) would need
    # an additional spatial split of the lane axis; depth-only tiling here.

    PAD = W + 1                              # keeps every tap slice in-bounds
    EXT = (td + 2) * HW + 2 * PAD

    # ---- glue (plain JAX, ~1x input bytes): depth halo + bf16 + lane flatten.
    # One haloed tile per grid step instead of 3 depth-shifted copies.
    # TODO(synk): a true 1x-traffic overlapping window needs pl.ANY + manual
    # make_async_copy; the per-tile halo costs only ~2/td extra input bytes.
    xp = jnp.pad(x, ((0, 0), (0, 0), (1, 1 + Dt - D), (0, 0), (0, 0)))
    xp = xp.astype(compute_dtype)                               # (B,Cin,Dt+2,H,W)
    tiles = [lax.slice_in_dim(xp, j * td, j * td + td + 2, axis=2)
             for j in range(nd)]
    slab = jnp.stack(tiles, axis=1)                             # (B,nd,Cin,td+2,H,W)
    slab = slab.reshape(B * nd, Cin, (td + 2) * HW)
    slab = jnp.pad(slab, ((0, 0), (0, 0), (PAD, PAD)))          # (B*nd, Cin, EXT)

    # (Cout, Cin, kd, kh, kw) -> (Cout, (kd,kh,kw,ci)): columns match the
    # in-kernel tap/patch row order.  bf16 operands, f32 accumulation.
    w_mat = jnp.transpose(conv_weight, (0, 2, 3, 4, 1)).reshape(Cout, K)
    w_mat = w_mat.astype(compute_dtype)

    # (kh, kw) validity masks over the flattened (d, h, w) lane axis.
    lo = np.arange(N)
    hh = (lo // W) % H
    ww = lo % W
    rows = []
    for kh in range(3):
        for kw in range(3):
            ok = ((hh + kh - 1 >= 0) & (hh + kh - 1 < H)
                  & (ww + kw - 1 >= 0) & (ww + kw - 1 < W))
            rows.append(ok)
    masks = jnp.asarray(np.stack(rows), dtype=compute_dtype)    # (9, N)

    gamma = ln_weight.astype(jnp.float32).reshape(Cout, 1)
    beta = ln_bias.astype(jnp.float32).reshape(Cout, 1)

    grid = (B, nd)
    out_bytes = B * Cout * Dt * HW * x.dtype.itemsize
    cost = pl.CostEstimate(
        flops=2 * B * nd * Cout * K * N + 8 * B * nd * Cout * N,
        transcendentals=B * nd * N,
        bytes_accessed=(slab.size * slab.dtype.itemsize
                        + w_mat.size * w_mat.dtype.itemsize
                        + masks.size * masks.dtype.itemsize
                        + out_bytes),
    )

    kernel = functools.partial(_stem_kernel, Cin=Cin, H=H, W=W, N=N)

    out3 = pl.pallas_call(
        kernel,
        # Output keeps the module dtype (f32); channels-on-sublanes layout so
        # the final NCDHW result is a pure (free) reshape -- no unpack pass.
        out_shape=jax.ShapeDtypeStruct((B, Cout, Dt * HW), x.dtype),
        grid_spec=pltpu.PrefetchScalarGridSpec(
            num_scalar_prefetch=0,
            grid=grid,
            in_specs=[
                pl.BlockSpec((1, Cin, EXT), lambda b, j: (b * nd + j, 0, 0)),
                pl.BlockSpec((Cout, K), lambda b, j: (0, 0)),     # conv weights
                pl.BlockSpec((9, N), lambda b, j: (0, 0)),        # (kh,kw) masks
                pl.BlockSpec((Cout, 1), lambda b, j: (0, 0)),     # gamma
                pl.BlockSpec((Cout, 1), lambda b, j: (0, 0)),     # beta
            ],
            out_specs=pl.BlockSpec((1, Cout, N), lambda b, j: (b, 0, j)),
        ),
        compiler_params=pltpu.CompilerParams(
            dimension_semantics=("parallel", "parallel"),
            vmem_limit_bytes=48 * 1024 * 1024,   # <= v7x's 64 MiB, fine on v5e/v6e
        ),
        cost_estimate=cost,
    )(slab, w_mat, masks, gamma, beta)

    # ---- glue: pure reshape to NCDHW (free); depth slice only if padded.
    out = out3.reshape(B, Cout, Dt, H, W)
    if Dt > D:
        out = out[:, :, :D]
    return out


def _reference_forward(x, conv_weight, ln_weight, ln_bias):
    """Pure-JAX reference mirroring the PyTorch module exactly (f32)."""
    conv = lax.conv_general_dilated(
        x, conv_weight,
        window_strides=(1, 1, 1),
        padding=((1, 1), (1, 1), (1, 1)),
        dimension_numbers=("NCDHW", "OIDHW", "NCDHW"),
    )
    mean = conv.mean(axis=1, keepdims=True)
    var = ((conv - mean) ** 2).mean(axis=1, keepdims=True)
    xn = (conv - mean) / jnp.sqrt(var + LN_EPS)
    g = ln_weight[None, :, None, None, None]
    b = ln_bias[None, :, None, None, None]
    return g * xn + b


if __name__ == "__main__":
    # Small shapes consistent with the module: B=2, Cin=4, Cout=32, D=H=W=8.
    B, Cin, Cout, D, H, W = 2, 4, 32, 8, 8, 8

    key = jax.random.PRNGKey(0)
    k_x, k_w, k_g, k_b = jax.random.split(key, 4)

    x = jax.random.normal(k_x, (B, Cin, D, H, W), dtype=jnp.float32)
    conv_weight = (jax.random.normal(k_w, (Cout, Cin, 3, 3, 3),
                                     dtype=jnp.float32) * 0.1)
    # LayerNorm init is ones/zeros; perturb slightly so the affine wiring is
    # actually exercised by the check.
    ln_weight = 1.0 + 0.1 * jax.random.normal(k_g, (Cout,), dtype=jnp.float32)
    ln_bias = 0.1 * jax.random.normal(k_b, (Cout,), dtype=jnp.float32)

    out = stem_layer_forward(x, conv_weight, ln_weight, ln_bias)
    out = jax.block_until_ready(out)

    ref = _reference_forward(x, conv_weight, ln_weight, ln_bias)
    assert out.shape == (B, Cout, D, H, W), out.shape
    # bf16 input/weight stream (f32 accumulation + f32 LayerNorm) -> loosened tol.
    assert jnp.allclose(out, ref, atol=5e-2, rtol=5e-2), (
        float(jnp.max(jnp.abs(out - ref))))

    print("KERNEL_OK")
</pallas_src>

<mosaic_0001>
module attributes {stable_mosaic.version = 11 : i64} {
  func.func @_stem_kernel(%arg0: i32, %arg1: i32, %arg2: memref<1x4x658xbf16, #tpu.memory_space<vmem>>, %arg3: memref<32x108xbf16, #tpu.memory_space<vmem>>, %arg4: memref<9x512xbf16, #tpu.memory_space<vmem>>, %arg5: memref<32x1xf32, #tpu.memory_space<vmem>>, %arg6: memref<32x1xf32, #tpu.memory_space<vmem>>, %arg7: memref<1x32x512xf32, #tpu.memory_space<vmem>>) attributes {dimension_semantics = [#tpu.dimension_semantics<parallel>, #tpu.dimension_semantics<parallel>], iteration_bounds = array<i64: 2, 1>, scalar_prefetch = 0 : i64, scratch_operands = 0 : i64, tpu.core_type = #tpu.core_type<tc>, window_params = [{transform_indices = @transform_0, window_bounds = array<i64: 1, 4, 658>}, {pipeline_mode = #tpu.pipeline_mode<synchronous>, transform_indices = @transform_1, window_bounds = array<i64: 32, 108>}, {pipeline_mode = #tpu.pipeline_mode<synchronous>, transform_indices = @transform_2, window_bounds = array<i64: 9, 512>}, {pipeline_mode = #tpu.pipeline_mode<synchronous>, transform_indices = @transform_3, window_bounds = array<i64: 32, 1>}, {pipeline_mode = #tpu.pipeline_mode<synchronous>, transform_indices = @transform_4, window_bounds = array<i64: 32, 1>}, {transform_indices = @transform_5, window_bounds = array<i64: 1, 32, 512>}]} {
    %c0 = arith.constant 0 : index
    %c0_0 = arith.constant 0 : index
    %c0_1 = arith.constant 0 : index
    %0 = vector.load %arg2[%c0, %c0_0, %c0_1] : memref<1x4x658xbf16, #tpu.memory_space<vmem>>, vector<1x4x512xbf16>
    %1 = vector.shape_cast %0 : vector<1x4x512xbf16> to vector<4x512xbf16>
    %c0_2 = arith.constant 0 : index
    %c0_3 = arith.constant 0 : index
    %2 = vector.load %arg4[%c0_2, %c0_3] : memref<9x512xbf16, #tpu.memory_space<vmem>>, vector<1x512xbf16>
    %3 = vector.broadcast %2 : vector<1x512xbf16> to vector<4x512xbf16>
    %4 = arith.mulf %1, %3 : vector<4x512xbf16>
    %c0_4 = arith.constant 0 : index
    %c0_5 = arith.constant 0 : index
    %c1 = arith.constant 1 : index
    %5 = vector.load %arg2[%c0_4, %c0_5, %c1] : memref<1x4x658xbf16, #tpu.memory_space<vmem>>, vector<1x4x512xbf16>
    %6 = vector.shape_cast %5 : vector<1x4x512xbf16> to vector<4x512xbf16>
    %c1_6 = arith.constant 1 : index
    %c0_7 = arith.constant 0 : index
    %7 = vector.load %arg4[%c1_6, %c0_7] : memref<9x512xbf16, #tpu.memory_space<vmem>>, vector<1x512xbf16>
    %8 = vector.broadcast %7 : vector<1x512xbf16> to vector<4x512xbf16>
    %9 = arith.mulf %6, %8 : vector<4x512xbf16>
    %c0_8 = arith.constant 0 : index
    %c0_9 = arith.constant 0 : index
    %c2 = arith.constant 2 : index
    %10 = vector.load %arg2[%c0_8, %c0_9, %c2] : memref<1x4x658xbf16, #tpu.memory_space<vmem>>, vector<1x4x512xbf16>
    %11 = vector.shape_cast %10 : vector<1x4x512xbf16> to vector<4x512xbf16>
    %c2_10 = arith.constant 2 : index
    %c0_11 = arith.constant 0 : index
    %12 = vector.load %arg4[%c2_10, %c0_11] : memref<9x512xbf16, #tpu.memory_space<vmem>>, vector<1x512xbf16>
    %13 = vector.broadcast %12 : vector<1x512xbf16> to vector<4x512xbf16>
    %14 = arith.mulf %11, %13 : vector<4x512xbf16>
    %c0_12 = arith.constant 0 : index
    %c0_13 = arith.constant 0 : index
    %c8 = arith.constant 8 : index
    %15 = vector.load %arg2[%c0_12, %c0_13, %c8] : memref<1x4x658xbf16, #tpu.memory_space<vmem>>, vector<1x4x512xbf16>
    %16 = vector.shape_cast %15 : vector<1x4x512xbf16> to vector<4x512xbf16>
    %c3 = arith.constant 3 : index
    %c0_14 = arith.constant 0 : index
    %17 = vector.load %arg4[%c3, %c0_14] : memref<9x512xbf16, #tpu.memory_space<vmem>>, vector<1x512xbf16>
    %18 = vector.broadcast %17 : vector<1x512xbf16> to vector<4x512xbf16>
    %19 = arith.mulf %16, %18 : vector<4x512xbf16>
    %c0_15 = arith.constant 0 : index
    %c0_16 = arith.constant 0 : index
    %c9 = arith.constant 9 : index
    %20 = vector.load %arg2[%c0_15, %c0_16, %c9] : memref<1x4x658xbf16, #tpu.memory_space<vmem>>, vector<1x4x512xbf16>
    %21 = vector.shape_cast %20 : vector<1x4x512xbf16> to vector<4x512xbf16>
    %c0_17 = arith.constant 0 : index
    %c0_18 = arith.constant 0 : index
    %c10 = arith.constant 10 : index
    %22 = vector.load %arg2[%c0_17, %c0_18, %c10] : memref<1x4x658xbf16, #tpu.memory_space<vmem>>, vector<1x4x512xbf16>
    %23 = vector.shape_cast %22 : vector<1x4x512xbf16> to vector<4x512xbf16>
    %c5 = arith.constant 5 : index
    %c0_19 = arith.constant 0 : index
    %24 = vector.load %arg4[%c5, %c0_19] : memref<9x512xbf16, #tpu.memory_space<vmem>>, vector<1x512xbf16>
    %25 = vector.broadcast %24 : vector<1x512xbf16> to vector<4x512xbf16>
    %26 = arith.mulf %23, %25 : vector<4x512xbf16>
    %c0_20 = arith.constant 0 : index
    %c0_21 = arith.constant 0 : index
    %c16 = arith.constant 16 : index
    %27 = vector.load %arg2[%c0_20, %c0_21, %c16] : memref<1x4x658xbf16, #tpu.memory_space<vmem>>, vector<1x4x512xbf16>
    %28 = vector.shape_cast %27 : vector<1x4x512xbf16> to vector<4x512xbf16>
    %c6 = arith.constant 6 : index
    %c0_22 = arith.constant 0 : index
    %29 = vector.load %arg4[%c6, %c0_22] : memref<9x512xbf16, #tpu.memory_space<vmem>>, vector<1x512xbf16>
    %30 = vector.broadcast %29 : vector<1x512xbf16> to vector<4x512xbf16>
    %31 = arith.mulf %28, %30 : vector<4x512xbf16>
    %c0_23 = arith.constant 0 : index
    %c0_24 = arith.constant 0 : index
    %c17 = arith.constant 17 : index
    %32 = vector.load %arg2[%c0_23, %c0_24, %c17] : memref<1x4x658xbf16, #tpu.memory_space<vmem>>, vector<1x4x512xbf16>
    %33 = vector.shape_cast %32 : vector<1x4x512xbf16> to vector<4x512xbf16>
    %c7 = arith.constant 7 : index
    %c0_25 = arith.constant 0 : index
    %34 = vector.load %arg4[%c7, %c0_25] : memref<9x512xbf16, #tpu.memory_space<vmem>>, vector<1x512xbf16>
    %35 = vector.broadcast %34 : vector<1x512xbf16> to vector<4x512xbf16>
    %36 = arith.mulf %33, %35 : vector<4x512xbf16>
    %c0_26 = arith.constant 0 : index
    %c0_27 = arith.constant 0 : index
    %c18 = arith.constant 18 : index
    %37 = vector.load %arg2[%c0_26, %c0_27, %c18] : memref<1x4x658xbf16, #tpu.memory_space<vmem>>, vector<1x4x512xbf16>
    %38 = vector.shape_cast %37 : vector<1x4x512xbf16> to vector<4x512xbf16>
    %c8_28 = arith.constant 8 : index
    %c0_29 = arith.constant 0 : index
    %39 = vector.load %arg4[%c8_28, %c0_29] : memref<9x512xbf16, #tpu.memory_space<vmem>>, vector<1x512xbf16>
    %40 = vector.broadcast %39 : vector<1x512xbf16> to vector<4x512xbf16>
    %41 = arith.mulf %38, %40 : vector<4x512xbf16>
    %c0_30 = arith.constant 0 : index
    %c0_31 = arith.constant 0 : index
    %c64 = arith.constant 64 : index
    %42 = vector.load %arg2[%c0_30, %c0_31, %c64] : memref<1x4x658xbf16, #tpu.memory_space<vmem>>, vector<1x4x512xbf16>
    %43 = vector.shape_cast %42 : vector<1x4x512xbf16> to vector<4x512xbf16>
    %c0_32 = arith.constant 0 : index
    %c0_33 = arith.constant 0 : index
    %44 = vector.load %arg4[%c0_32, %c0_33] : memref<9x512xbf16, #tpu.memory_space<vmem>>, vector<1x512xbf16>
    %45 = vector.broadcast %44 : vector<1x512xbf16> to vector<4x512xbf16>
    %46 = arith.mulf %43, %45 : vector<4x512xbf16>
    %c0_34 = arith.constant 0 : index
    %c0_35 = arith.constant 0 : index
    %c65 = arith.constant 65 : index
    %47 = vector.load %arg2[%c0_34, %c0_35, %c65] : memref<1x4x658xbf16, #tpu.memory_space<vmem>>, vector<1x4x512xbf16>
    %48 = vector.shape_cast %47 : vector<1x4x512xbf16> to vector<4x512xbf16>
    %c1_36 = arith.constant 1 : index
    %c0_37 = arith.constant 0 : index
    %49 = vector.load %arg4[%c1_36, %c0_37] : memref<9x512xbf16, #tpu.memory_space<vmem>>, vector<1x512xbf16>
    %50 = vector.broadcast %49 : vector<1x512xbf16> to vector<4x512xbf16>
    %51 = arith.mulf %48, %50 : vector<4x512xbf16>
    %c0_38 = arith.constant 0 : index
    %c0_39 = arith.constant 0 : index
    %c66 = arith.constant 66 : index
    %52 = vector.load %arg2[%c0_38, %c0_39, %c66] : memref<1x4x658xbf16, #tpu.memory_space<vmem>>, vector<1x4x512xbf16>
    %53 = vector.shape_cast %52 : vector<1x4x512xbf16> to vector<4x512xbf16>
    %c2_40 = arith.constant 2 : index
    %c0_41 = arith.constant 0 : index
    %54 = vector.load %arg4[%c2_40, %c0_41] : memref<9x512xbf16, #tpu.memory_space<vmem>>, vector<1x512xbf16>
    %55 = vector.broadcast %54 : vector<1x512xbf16> to vector<4x512xbf16>
    %56 = arith.mulf %53, %55 : vector<4x512xbf16>
    %c0_42 = arith.constant 0 : index
    %c0_43 = arith.constant 0 : index
    %c72 = arith.constant 72 : index
    %57 = vector.load %arg2[%c0_42, %c0_43, %c72] : memref<1x4x658xbf16, #tpu.memory_space<vmem>>, vector<1x4x512xbf16>
    %58 = vector.shape_cast %57 : vector<1x4x512xbf16> to vector<4x512xbf16>
    %c3_44 = arith.constant 3 : index
    %c0_45 = arith.constant 0 : index
    %59 = vector.load %arg4[%c3_44, %c0_45] : memref<9x512xbf16, #tpu.memory_space<vmem>>, vector<1x512xbf16>
    %60 = vector.broadcast %59 : vector<1x512xbf16> to vector<4x512xbf16>
    %61 = arith.mulf %58, %60 : vector<4x512xbf16>
    %c0_46 = arith.constant 0 : index
    %c0_47 = arith.constant 0 : index
    %c73 = arith.constant 73 : index
    %62 = vector.load %arg2[%c0_46, %c0_47, %c73] : memref<1x4x658xbf16, #tpu.memory_space<vmem>>, vector<1x4x512xbf16>
    %63 = vector.shape_cast %62 : vector<1x4x512xbf16> to vector<4x512xbf16>
    %c0_48 = arith.constant 0 : index
    %c0_49 = arith.constant 0 : index
    %c74 = arith.constant 74 : index
    %64 = vector.load %arg2[%c0_48, %c0_49, %c74] : memref<1x4x658xbf16, #tpu.memory_space<vmem>>, vector<1x4x512xbf16>
    %65 = vector.shape_cast %64 : vector<1x4x512xbf16> to vector<4x512xbf16>
    %c5_50 = arith.constant 5 : index
    %c0_51 = arith.constant 0 : index
    %66 = vector.load %arg4[%c5_50, %c0_51] : memref<9x512xbf16, #tpu.memory_space<vmem>>, vector<1x512xbf16>
    %67 = vector.broadcast %66 : vector<1x512xbf16> to vector<4x512xbf16>
    %68 = arith.mulf %65, %67 : vector<4x512xbf16>
    %c0_52 = arith.constant 0 : index
    %c0_53 = arith.constant 0 : index
    %c80 = arith.constant 80 : index
    %69 = vector.load %arg2[%c0_52, %c0_53, %c80] : memref<1x4x658xbf16, #tpu.memory_space<vmem>>, vector<1x4x512xbf16>
    %70 = vector.shape_cast %69 : vector<1x4x512xbf16> to vector<4x512xbf16>
    %c6_54 = arith.constant 6 : index
    %c0_55 = arith.constant 0 : index
    %71 = vector.load %arg4[%c6_54, %c0_55] : memref<9x512xbf16, #tpu.memory_space<vmem>>, vector<1x512xbf16>
    %72 = vector.broadcast %71 : vector<1x512xbf16> to vector<4x512xbf16>
    %73 = arith.mulf %70, %72 : vector<4x512xbf16>
    %c0_56 = arith.constant 0 : index
    %c0_57 = arith.constant 0 : index
    %c81 = arith.constant 81 : index
    %74 = vector.load %arg2[%c0_56, %c0_57, %c81] : memref<1x4x658xbf16, #tpu.memory_space<vmem>>, vector<1x4x512xbf16>
    %75 = vector.shape_cast %74 : vector<1x4x512xbf16> to vector<4x512xbf16>
    %c7_58 = arith.constant 7 : index
    %c0_59 = arith.constant 0 : index
    %76 = vector.load %arg4[%c7_58, %c0_59] : memref<9x512xbf16, #tpu.memory_space<vmem>>, vector<1x512xbf16>
    %77 = vector.broadcast %76 : vector<1x512xbf16> to vector<4x512xbf16>
    %78 = arith.mulf %75, %77 : vector<4x512xbf16>
    %c0_60 = arith.constant 0 : index
    %c0_61 = arith.constant 0 : index
    %c82 = arith.constant 82 : index
    %79 = vector.load %arg2[%c0_60, %c0_61, %c82] : memref<1x4x658xbf16, #tpu.memory_space<vmem>>, vector<1x4x512xbf16>
    %80 = vector.shape_cast %79 : vector<1x4x512xbf16> to vector<4x512xbf16>
    %c8_62 = arith.constant 8 : index
    %c0_63 = arith.constant 0 : index
    %81 = vector.load %arg4[%c8_62, %c0_63] : memref<9x512xbf16, #tpu.memory_space<vmem>>, vector<1x512xbf16>
    %82 = vector.broadcast %81 : vector<1x512xbf16> to vector<4x512xbf16>
    %83 = arith.mulf %80, %82 : vector<4x512xbf16>
    %c0_64 = arith.constant 0 : index
    %c0_65 = arith.constant 0 : index
    %c128 = arith.constant 128 : index
    %84 = vector.load %arg2[%c0_64, %c0_65, %c128] : memref<1x4x658xbf16, #tpu.memory_space<vmem>>, vector<1x4x512xbf16>
    %85 = vector.shape_cast %84 : vector<1x4x512xbf16> to vector<4x512xbf16>
    %c0_66 = arith.constant 0 : index
    %c0_67 = arith.constant 0 : index
    %86 = vector.load %arg4[%c0_66, %c0_67] : memref<9x512xbf16, #tpu.memory_space<vmem>>, vector<1x512xbf16>
    %87 = vector.broadcast %86 : vector<1x512xbf16> to vector<4x512xbf16>
    %88 = arith.mulf %85, %87 : vector<4x512xbf16>
    %c0_68 = arith.constant 0 : index
    %c0_69 = arith.constant 0 : index
    %c129 = arith.constant 129 : index
    %89 = vector.load %arg2[%c0_68, %c0_69, %c129] : memref<1x4x658xbf16, #tpu.memory_space<vmem>>, vector<1x4x512xbf16>
    %90 = vector.shape_cast %89 : vector<1x4x512xbf16> to vector<4x512xbf16>
    %c1_70 = arith.constant 1 : index
    %c0_71 = arith.constant 0 : index
    %91 = vector.load %arg4[%c1_70, %c0_71] : memref<9x512xbf16, #tpu.memory_space<vmem>>, vector<1x512xbf16>
    %92 = vector.broadcast %91 : vector<1x512xbf16> to vector<4x512xbf16>
    %93 = arith.mulf %90, %92 : vector<4x512xbf16>
    %c0_72 = arith.constant 0 : index
    %c0_73 = arith.constant 0 : index
    %c130 = arith.constant 130 : index
    %94 = vector.load %arg2[%c0_72, %c0_73, %c130] : memref<1x4x658xbf16, #tpu.memory_space<vmem>>, vector<1x4x512xbf16>
    %95 = vector.shape_cast %94 : vector<1x4x512xbf16> to vector<4x512xbf16>
    %c2_74 = arith.constant 2 : index
    %c0_75 = arith.constant 0 : index
    %96 = vector.load %arg4[%c2_74, %c0_75] : memref<9x512xbf16, #tpu.memory_space<vmem>>, vector<1x512xbf16>
    %97 = vector.broadcast %96 : vector<1x512xbf16> to vector<4x512xbf16>
    %98 = arith.mulf %95, %97 : vector<4x512xbf16>
    %c0_76 = arith.constant 0 : index
    %c0_77 = arith.constant 0 : index
    %c136 = arith.constant 136 : index
    %99 = vector.load %arg2[%c0_76, %c0_77, %c136] : memref<1x4x658xbf16, #tpu.memory_space<vmem>>, vector<1x4x512xbf16>
    %100 = vector.shape_cast %99 : vector<1x4x512xbf16> to vector<4x512xbf16>
    %c3_78 = arith.constant 3 : index
    %c0_79 = arith.constant 0 : index
    %101 = vector.load %arg4[%c3_78, %c0_79] : memref<9x512xbf16, #tpu.memory_space<vmem>>, vector<1x512xbf16>
    %102 = vector.broadcast %101 : vector<1x512xbf16> to vector<4x512xbf16>
    %103 = arith.mulf %100, %102 : vector<4x512xbf16>
    %c0_80 = arith.constant 0 : index
    %c0_81 = arith.constant 0 : index
    %c137 = arith.constant 137 : index
    %104 = vector.load %arg2[%c0_80, %c0_81, %c137] : memref<1x4x658xbf16, #tpu.memory_space<vmem>>, vector<1x4x512xbf16>
    %105 = vector.shape_cast %104 : vector<1x4x512xbf16> to vector<4x512xbf16>
    %c0_82 = arith.constant 0 : index
    %c0_83 = arith.constant 0 : index
    %c138 = arith.constant 138 : index
    %106 = vector.load %arg2[%c0_82, %c0_83, %c138] : memref<1x4x658xbf16, #tpu.memory_space<vmem>>, vector<1x4x512xbf16>
    %107 = vector.shape_cast %106 : vector<1x4x512xbf16> to vector<4x512xbf16>
    %c5_84 = arith.constant 5 : index
    %c0_85 = arith.constant 0 : index
    %108 = vector.load %arg4[%c5_84, %c0_85] : memref<9x512xbf16, #tpu.memory_space<vmem>>, vector<1x512xbf16>
    %109 = vector.broadcast %108 : vector<1x512xbf16> to vector<4x512xbf16>
    %110 = arith.mulf %107, %109 : vector<4x512xbf16>
    %c0_86 = arith.constant 0 : index
    %c0_87 = arith.constant 0 : index
    %c144 = arith.constant 144 : index
    %111 = vector.load %arg2[%c0_86, %c0_87, %c144] : memref<1x4x658xbf16, #tpu.memory_space<vmem>>, vector<1x4x512xbf16>
    %112 = vector.shape_cast %111 : vector<1x4x512xbf16> to vector<4x512xbf16>
    %c6_88 = arith.constant 6 : index
    %c0_89 = arith.constant 0 : index
    %113 = vector.load %arg4[%c6_88, %c0_89] : memref<9x512xbf16, #tpu.memory_space<vmem>>, vector<1x512xbf16>
    %114 = vector.broadcast %113 : vector<1x512xbf16> to vector<4x512xbf16>
    %115 = arith.mulf %112, %114 : vector<4x512xbf16>
    %c0_90 = arith.constant 0 : index
    %c0_91 = arith.constant 0 : index
    %c145 = arith.constant 145 : index
    %116 = vector.load %arg2[%c0_90, %c0_91, %c145] : memref<1x4x658xbf16, #tpu.memory_space<vmem>>, vector<1x4x512xbf16>
    %117 = vector.shape_cast %116 : vector<1x4x512xbf16> to vector<4x512xbf16>
    %c7_92 = arith.constant 7 : index
    %c0_93 = arith.constant 0 : index
    %118 = vector.load %arg4[%c7_92, %c0_93] : memref<9x512xbf16, #tpu.memory_space<vmem>>, vector<1x512xbf16>
    %119 = vector.broadcast %118 : vector<1x512xbf16> to vector<4x512xbf16>
    %120 = arith.mulf %117, %119 : vector<4x512xbf16>
    %c0_94 = arith.constant 0 : index
    %c0_95 = arith.constant 0 : index
    %c146 = arith.constant 146 : index
    %121 = vector.load %arg2[%c0_94, %c0_95, %c146] : memref<1x4x658xbf16, #tpu.memory_space<vmem>>, vector<1x4x512xbf16>
    %122 = vector.shape_cast %121 : vector<1x4x512xbf16> to vector<4x512xbf16>
    %c8_96 = arith.constant 8 : index
    %c0_97 = arith.constant 0 : index
    %123 = vector.load %arg4[%c8_96, %c0_97] : memref<9x512xbf16, #tpu.memory_space<vmem>>, vector<1x512xbf16>
    %124 = vector.broadcast %123 : vector<1x512xbf16> to vector<4x512xbf16>
    %125 = arith.mulf %122, %124 : vector<4x512xbf16>
    %126 = tpu.concatenate %4, %9, %14, %19, %21, %26, %31, %36, %41, %46, %51, %56, %61, %63, %68, %73 in 0 : vector<4x512xbf16>, vector<4x512xbf16>, vector<4x512xbf16>, vector<4x512xbf16>, vector<4x512xbf16>, vector<4x512xbf16>, vector<4x512xbf16>, vector<4x512xbf16>, vector<4x512xbf16>, vector<4x512xbf16>, vector<4x512xbf16>, vector<4x512xbf16>, vector<4x512xbf16>, vector<4x512xbf16>, vector<4x512xbf16>, vector<4x512xbf16> -> vector<64x512xbf16>
    %127 = tpu.concatenate %78, %83, %88, %93, %98, %103, %105, %110, %115, %120, %125 in 0 : vector<4x512xbf16>, vector<4x512xbf16>, vector<4x512xbf16>, vector<4x512xbf16>, vector<4x512xbf16>, vector<4x512xbf16>, vector<4x512xbf16>, vector<4x512xbf16>, vector<4x512xbf16>, vector<4x512xbf16>, vector<4x512xbf16> -> vector<44x512xbf16>
    %128 = tpu.concatenate %126, %127 in 0 : vector<64x512xbf16>, vector<44x512xbf16> -> vector<108x512xbf16>
    %c0_98 = arith.constant 0 : index
    %c0_99 = arith.constant 0 : index
    %129 = vector.load %arg3[%c0_98, %c0_99] : memref<32x108xbf16, #tpu.memory_space<vmem>>, vector<32x108xbf16>
    %cst = arith.constant dense<0.000000e+00> : vector<32x512xf32>
    %130 = tpu.matmul %129, %128, %cst {dimension_numbers = #tpu.dot_dimension_numbers<[1], [0], [0], [1], [0, 0, 1, 1], [], []>} : vector<32x108xbf16>, vector<108x512xbf16>, vector<32x512xf32> -> vector<32x512xf32>
    %cst_100 = arith.constant dense<0.000000e+00> : vector<512xf32>
    %131 = vector.multi_reduction <add>, %130, %cst_100 [0] : vector<32x512xf32> to vector<512xf32>
    %132 = vector.shape_cast %131 : vector<512xf32> to vector<1x512xf32>
    %cst_101 = arith.constant 3.200000e+01 : f32
    %133 = vector.broadcast %cst_101 : f32 to vector<1x512xf32>
    %134 = arith.divf %132, %133 : vector<1x512xf32>
    %135 = vector.broadcast %134 : vector<1x512xf32> to vector<32x512xf32>
    %136 = arith.subf %130, %135 : vector<32x512xf32>
    %137 = arith.mulf %136, %136 : vector<32x512xf32>
    %cst_102 = arith.constant dense<0.000000e+00> : vector<512xf32>
    %138 = vector.multi_reduction <add>, %137, %cst_102 [0] : vector<32x512xf32> to vector<512xf32>
    %139 = vector.shape_cast %138 : vector<512xf32> to vector<1x512xf32>
    %cst_103 = arith.constant 3.200000e+01 : f32
    %140 = vector.broadcast %cst_103 : f32 to vector<1x512xf32>
    %141 = arith.divf %139, %140 : vector<1x512xf32>
    %cst_104 = arith.constant 9.99999997E-7 : f32
    %142 = vector.broadcast %cst_104 : f32 to vector<1x512xf32>
    %143 = arith.addf %141, %142 : vector<1x512xf32>
    %144 = math.rsqrt %143 : vector<1x512xf32>
    %145 = vector.broadcast %144 : vector<1x512xf32> to vector<32x512xf32>
    %146 = arith.mulf %136, %145 : vector<32x512xf32>
    %c0_105 = arith.constant 0 : index
    %c0_106 = arith.constant 0 : index
    %147 = vector.load %arg5[%c0_105, %c0_106] : memref<32x1xf32, #tpu.memory_space<vmem>>, vector<32x1xf32>
    %148 = vector.broadcast %147 : vector<32x1xf32> to vector<32x512xf32>
    %149 = arith.mulf %146, %148 : vector<32x512xf32>
    %c0_107 = arith.constant 0 : index
    %c0_108 = arith.constant 0 : index
    %150 = vector.load %arg6[%c0_107, %c0_108] : memref<32x1xf32, #tpu.memory_space<vmem>>, vector<32x1xf32>
    %151 = vector.broadcast %150 : vector<32x1xf32> to vector<32x512xf32>
    %152 = arith.addf %149, %151 : vector<32x512xf32>
    %c0_109 = arith.constant 0 : index
    %c0_110 = arith.constant 0 : index
    %c0_111 = arith.constant 0 : index
    %153 = vector.load %arg7[%c0_109, %c0_110, %c0_111] : memref<1x32x512xf32, #tpu.memory_space<vmem>>, vector<1x32x512xf32>
    %154 = vector.shape_cast %153 : vector<1x32x512xf32> to vector<32x512xf32>
    %155 = vector.shape_cast %152 : vector<32x512xf32> to vector<1x32x512xf32>
    tpu.vector_store %arg7[%c0_109, %c0_110, %c0_111], %155 {strides = array<i32>} : memref<1x32x512xf32, #tpu.memory_space<vmem>>, vector<1x32x512xf32>,
    return
  }
  func.func @transform_0(%arg0: i32, %arg1: i32) -> (i32, i32, i32) {
    %c1_i32 = arith.constant 1 : i32
    %0 = arith.muli %arg0, %c1_i32 : i32
    %1 = arith.addi %0, %arg1 : i32
    %c0_i32 = arith.constant 0 : i32
    %c0_i32_0 = arith.constant 0 : i32
    %c0_i32_1 = arith.constant 0 : i32
    return %1, %c0_i32, %c0_i32_0 : i32, i32, i32
  }
  func.func @transform_1(%arg0: i32, %arg1: i32) -> (i32, i32) {
    %c0_i32 = arith.constant 0 : i32
    %c0_i32_0 = arith.constant 0 : i32
    %c0_i32_1 = arith.constant 0 : i32
    return %c0_i32, %c0_i32_0 : i32, i32
  }
  func.func @transform_2(%arg0: i32, %arg1: i32) -> (i32, i32) {
    %c0_i32 = arith.constant 0 : i32
    %c0_i32_0 = arith.constant 0 : i32
    %c0_i32_1 = arith.constant 0 : i32
    return %c0_i32, %c0_i32_0 : i32, i32
  }
  func.func @transform_3(%arg0: i32, %arg1: i32) -> (i32, i32) {
    %c0_i32 = arith.constant 0 : i32
    %c0_i32_0 = arith.constant 0 : i32
    %c0_i32_1 = arith.constant 0 : i32
    return %c0_i32, %c0_i32_0 : i32, i32
  }
  func.func @transform_4(%arg0: i32, %arg1: i32) -> (i32, i32) {
    %c0_i32 = arith.constant 0 : i32
    %c0_i32_0 = arith.constant 0 : i32
    %c0_i32_1 = arith.constant 0 : i32
    return %c0_i32, %c0_i32_0 : i32, i32
  }
  func.func @transform_5(%arg0: i32, %arg1: i32) -> (i32, i32, i32) {
    %c0_i32 = arith.constant 0 : i32
    %c0_i32_0 = arith.constant 0 : i32
    return %arg0, %c0_i32, %arg1 : i32, i32, i32
  }
}

</mosaic_0001>

<llo_original>
// kernel: stem_layer_forward.1
$region0: #{stem_layer_forward.1}
  #allocation0 [shape = 'u32[]', space=smem, size = 0x4, offset = 0x4, fixed_abs, tag = 'smem constant byte address 0x4 - core index']
  #allocation1 [shape = 'u32[144,128]{1,0:T(1,128)}', space=vmem, size = 0x12000, scoped, tag = 'internal scratch']
  %s0 = inlined_call_operand.vmem [shape: bf16[2,4,658], index: 0, kind: input, shape index: {}]
  %s1 = inlined_call_operand.vmem [shape: bf16[32,108], index: 1, kind: input, shape index: {}]
  %s2 = inlined_call_operand.vmem [shape: bf16[9,512], index: 2, kind: input, shape index: {}]
  %s3 = inlined_call_operand.vmem [shape: f32[32,1], index: 3, kind: input, shape index: {}]
  %s4 = inlined_call_operand.vmem [shape: f32[32,1], index: 4, kind: input, shape index: {}]
  %s5 = inlined_call_operand.vmem [shape: f32[2,32,512], index: 5, kind: output, shape index: {}]
  %s6 = sld [smem:[#allocation0]]
  $region53: #{stem_layer_forward.1} parent=0
    _
  %s8 = ssub.s32 1, %s6
  %s9 = scalar_select 0, %s8, %s6
  loop: start=0, step=1, limit=4
  $region2: #{stem_layer_forward.1} parent=0 // loop_pre_header
    _
  $region3: #{stem_layer_forward.1} parent=0 // loop_header
    %s11 = sphi 0, %s15
    %p12 = scmp.ge.s32.totalorder %s11, 4
    %s18 = sphi 0, %s30
    %s19 = sphi 0, %s26
    %s20 = sphi 0, %s18
    %s21 = sphi 0, %s19
    %s22 = sphi 0, %s20
    %s23 = sphi 0, %s21
    %s35 = sphi 0, %s37
    %s38 = sphi 0, %s35
    %s39 = sphi 0, %s38
    %s55 = sphi 0, %s39
    %s59 = sphi 0, %s59
    %s61 = sphi 0, %s59
    %s62 = sphi 0, %s61
    %s76 = sphi 0, %s62
    %s80 = sphi 0, %s80
    %s82 = sphi 0, %s80
    %s83 = sphi 0, %s82
    %s97 = sphi 0, %s83
    %s101 = sphi 0, %s101
    %s103 = sphi 0, %s101
    %s104 = sphi 0, %s103
    %s118 = sphi 0, %s104
    %s122 = sphi 0, %s122
    %s124 = sphi 0, %s122
    %s125 = sphi 0, %s124
    %s139 = sphi 0, %s125
    %s147 = sphi 0, %s149
    %s150 = sphi 0, %s147
    %s151 = sphi 0, %s150
    %s167 = sphi 0, %s151
  $region4: #{stem_layer_forward.1} parent=0 // loop_header_branch
    %14 = sbr.rel (%p12) target = $region8
  $region5: #{stem_layer_forward.1} parent=0 // loop_body
    %s16 = ssub.s32 %s11, 1
    %s17 = ssub.s32 %s11, 2
    %s24 = sadd.s32 1, %s19
    %p25 = scmp.ge.s32.totalorder %s24, 1
    %s26 = scalar_select %p25, 0, %s24
    %s27 = sadd.s32 1, %s18
    %s28 = scalar_select %p25, %s27, %s18
    %p29 = scmp.ge.s32.totalorder %s28, 2
    %s30 = scalar_select %p29, 0, %s28
    %s31 = sadd.s32 %s18, %s19
    %s32 = sadd.s32 %s30, %s26
    %s33 = ssub.s32 %s31, %s32
    %p34 = scmp.eq.s32.totalorder %s33, 0
    %s36 = sadd.s32 %s35, 1
    %s37 = scalar_select %p34, %s35, %s36
    %p40 = pneg %p34
    %p41 = scmp.eq.s32.totalorder %s11, 1
    %p42 = por %p40, %p41
    %p43 = scmp.ne.s32.totalorder %s35, %s38
    %p44 = scmp.eq.s32.totalorder %s11, 0
    %p45 = por %p43, %p44
    %p46 = scmp.ne.s32.totalorder %s35, %s38
    %p47 = scmp.eq.s32.totalorder %s16, 1
    %p48 = por %p46, %p47
    %p49 = scmp.ne.s32.totalorder %s38, %s39
    %p50 = scmp.eq.s32.totalorder %s16, 0
    %p51 = por %p49, %p50
    %p52 = scmp.ne.s32.totalorder %s38, %s39
    %p53 = scmp.eq.s32.totalorder %s17, 1
    %p54 = por %p52, %p53
    %p56 = scmp.ne.s32.totalorder %s39, %s55
    %p57 = scmp.eq.s32.totalorder %s17, 0
    %p58 = por %p56, %p57
    %s60 = sadd.s32 %s59, 1
    %p63 = scmp.eq.s32.totalorder %s11, 1
    %p64 = scmp.ne.s32.totalorder %s59, %s61
    %p65 = scmp.eq.s32.totalorder %s11, 0
    %p66 = por %p64, %p65
    %p67 = scmp.ne.s32.totalorder %s59, %s61
    %p68 = scmp.eq.s32.totalorder %s16, 1
    %p69 = por %p67, %p68
    %p70 = scmp.ne.s32.totalorder %s61, %s62
    %p71 = scmp.eq.s32.totalorder %s16, 0
    %p72 = por %p70, %p71
    %p73 = scmp.ne.s32.totalorder %s61, %s62
    %p74 = scmp.eq.s32.totalorder %s17, 1
    %p75 = por %p73, %p74
    %p77 = scmp.ne.s32.totalorder %s62, %s76
    %p78 = scmp.eq.s32.totalorder %s17, 0
    %p79 = por %p77, %p78
    %s81 = sadd.s32 %s80, 1
    %p84 = scmp.eq.s32.totalorder %s11, 1
    %p85 = scmp.ne.s32.totalorder %s80, %s82
    %p86 = scmp.eq.s32.totalorder %s11, 0
    %p87 = por %p85, %p86
    %p88 = scmp.ne.s32.totalorder %s80, %s82
    %p89 = scmp.eq.s32.totalorder %s16, 1
    %p90 = por %p88, %p89
    %p91 = scmp.ne.s32.totalorder %s82, %s83
    %p92 = scmp.eq.s32.totalorder %s16, 0
    %p93 = por %p91, %p92
    %p94 = scmp.ne.s32.totalorder %s82, %s83
    %p95 = scmp.eq.s32.totalorder %s17, 1
    %p96 = por %p94, %p95
    %p98 = scmp.ne.s32.totalorder %s83, %s97
    %p99 = scmp.eq.s32.totalorder %s17, 0
    %p100 = por %p98, %p99
    %s102 = sadd.s32 %s101, 1
    %p105 = scmp.eq.s32.totalorder %s11, 1
    %p106 = scmp.ne.s32.totalorder %s101, %s103
    %p107 = scmp.eq.s32.totalorder %s11, 0
    %p108 = por %p106, %p107
    %p109 = scmp.ne.s32.totalorder %s101, %s103
    %p110 = scmp.eq.s32.totalorder %s16, 1
    %p111 = por %p109, %p110
    %p112 = scmp.ne.s32.totalorder %s103, %s104
    %p113 = scmp.eq.s32.totalorder %s16, 0
    %p114 = por %p112, %p113
    %p115 = scmp.ne.s32.totalorder %s103, %s104
    %p116 = scmp.eq.s32.totalorder %s17, 1
    %p117 = por %p115, %p116
    %p119 = scmp.ne.s32.totalorder %s104, %s118
    %p120 = scmp.eq.s32.totalorder %s17, 0
    %p121 = por %p119, %p120
    %s123 = sadd.s32 %s122, 1
    %p126 = scmp.eq.s32.totalorder %s11, 1
    %p127 = scmp.ne.s32.totalorder %s122, %s124
    %p128 = scmp.eq.s32.totalorder %s11, 0
    %p129 = por %p127, %p128
    %p130 = scmp.ne.s32.totalorder %s122, %s124
    %p131 = scmp.eq.s32.totalorder %s16, 1
    %p132 = por %p130, %p131
    %p133 = scmp.ne.s32.totalorder %s124, %s125
    %p134 = scmp.eq.s32.totalorder %s16, 0
    %p135 = por %p133, %p134
    %p136 = scmp.ne.s32.totalorder %s124, %s125
    %p137 = scmp.eq.s32.totalorder %s17, 1
    %p138 = por %p136, %p137
    %p140 = scmp.ne.s32.totalorder %s125, %s139
    %p141 = scmp.eq.s32.totalorder %s17, 0
    %p142 = por %p140, %p141
    %s143 = ssub.s32 %s18, %s30
    %s144 = ssub.s32 %s19, %s26
    %s145 = sor.u32 %s143, %s144
    %p146 = scmp.eq.s32.totalorder %s145, 0
    %s148 = sadd.s32 %s147, 1
    %s149 = scalar_select %p146, %s147, %s148
    %p152 = pneg %p146
    %p153 = scmp.eq.s32.totalorder %s11, 1
    %p154 = por %p152, %p153
    %p155 = scmp.ne.s32.totalorder %s147, %s150
    %p156 = scmp.eq.s32.totalorder %s11, 0
    %p157 = por %p155, %p156
    %p158 = scmp.ne.s32.totalorder %s147, %s150
    %p159 = scmp.eq.s32.totalorder %s16, 1
    %p160 = por %p158, %p159
    %p161 = scmp.ne.s32.totalorder %s150, %s151
    %p162 = scmp.eq.s32.totalorder %s16, 0
    %p163 = por %p161, %p162
    %p164 = scmp.ne.s32.totalorder %s150, %s151
    %p165 = scmp.eq.s32.totalorder %s17, 1
    %p166 = por %p164, %p165
    %p168 = scmp.ne.s32.totalorder %s151, %s167
    %p169 = scmp.eq.s32.totalorder %s17, 0
    %p170 = por %p168, %p169
    %p171 = scmp.le.s32.totalorder 1, %s11
    %p172 = scmp.lt.s32.totalorder %s11, 3
    %p173 = pnand %p171, %p172
    %p174 = pneg %p173
    // Predicated region
    $region9: #{stem_layer_forward.1} parent=5 // pred_check
      _
    $region10: #{stem_layer_forward.1} parent=5 // pred_check_branch
      %176 = sbr.rel (%p173) target = $region12
    $region11: #{stem_layer_forward.1} parent=5 // pred_region
      %s177 = ssub.s32 %s11, 1
      // Predicated region
      $region13: #{stem_layer_forward.1} parent=11 // pred_check
        %p178 = pneg %p72
      $region14: #{stem_layer_forward.1} parent=11 // pred_check_branch
        %180 = sbr.rel (%p178) target = $region16
      $region15: #{stem_layer_forward.1} parent=11 // pred_region
        _
      $region16: #{stem_layer_forward.1} parent=11 // pred_fallthru
        _
      // Predicated region
      $region17: #{stem_layer_forward.1} parent=11 // pred_check
        %p181 = pneg %p93
      $region18: #{stem_layer_forward.1} parent=11 // pred_check_branch
        %183 = sbr.rel (%p181) target = $region20
      $region19: #{stem_layer_forward.1} parent=11 // pred_region
        _
      $region20: #{stem_layer_forward.1} parent=11 // pred_fallthru
        _
      // Predicated region
      $region21: #{stem_layer_forward.1} parent=11 // pred_check
        %p184 = pneg %p114
      $region22: #{stem_layer_forward.1} parent=11 // pred_check_branch
        %186 = sbr.rel (%p184) target = $region24
      $region23: #{stem_layer_forward.1} parent=11 // pred_region
        _
      $region24: #{stem_layer_forward.1} parent=11 // pred_fallthru
        _
      // Predicated region
      $region25: #{stem_layer_forward.1} parent=11 // pred_check
        %p187 = pneg %p135
      $region26: #{stem_layer_forward.1} parent=11 // pred_check_branch
        %189 = sbr.rel (%p187) target = $region28
      $region27: #{stem_layer_forward.1} parent=11 // pred_region
        _
      $region28: #{stem_layer_forward.1} parent=11 // pred_fallthru
        _
    $region12: #{stem_layer_forward.1} parent=5 // pred_fallthru
      _
    %p190 = scmp.lt.s32.totalorder %s11, 2
    // Predicated region
    $region29: #{stem_layer_forward.1} parent=5 // pred_check
      %p191 = pneg %p190
    $region30: #{stem_layer_forward.1} parent=5 // pred_check_branch
      %193 = sbr.rel (%p191) target = $region32
    $region31: #{stem_layer_forward.1} parent=5 // pred_region
      // Predicated region
      $region33: #{stem_layer_forward.1} parent=31 // pred_check
        %p194 = pneg %p45
      $region34: #{stem_layer_forward.1} parent=31 // pred_check_branch
        %196 = sbr.rel (%p194) target = $region36
      $region35: #{stem_layer_forward.1} parent=31 // pred_region
        %s197 = sadd.s32 %s18, %s19
        %p198 = scmp.lt.s32.totalorder %s197, 1
        %s199 = scalar_select %p198, %s197, 1
        %s200 = smul.addr %s199, 6
        %s201 = smul.addr %s200, 2
        %s202 = scalar_lea.vmem %s0, %s201
        %s203 = sadd.s32 %s18, %s19
      $region36: #{stem_layer_forward.1} parent=31 // pred_fallthru
        _
    $region32: #{stem_layer_forward.1} parent=5 // pred_fallthru
      _
    %p204 = scmp.le.s32.totalorder 1, %s11
    %p205 = scmp.lt.s32.totalorder %s11, 3
    %p206 = pnand %p204, %p205
    %p207 = pneg %p206
    // Predicated region
    $region37: #{stem_layer_forward.1} parent=5 // pred_check
      _
    $region38: #{stem_layer_forward.1} parent=5 // pred_check_branch
      %209 = sbr.rel (%p206) target = $region40
    $region39: #{stem_layer_forward.1} parent=5 // pred_region
      %s210 = ssub.s32 %s11, 1
      %s211 = sadd.s32 %s20, %s21
      %p212 = scmp.lt.s32.totalorder %s211, 1
      %s213 = scalar_select %p212, %s211, 1
      %s214 = smul.addr %s213, 6
      %s215 = smul.addr %s214, 2
      %s216 = scalar_lea.vmem %s0, %s215
      %p217 = pneg %p51
      %p218 = pneg %p48
      %p219 = pneg %p72
      %p220 = pneg %p69
      %p221 = pneg %p93
      %p222 = pneg %p90
      %p223 = pneg %p114
      %p224 = pneg %p111
      %p225 = pneg %p135
      %p226 = pneg %p132
      %p227 = pneg %p163
      %p228 = pneg %p160
      %s229 = smul.u32 4, %s21
      %p230 = scmp.lt.s32.totalorder %s20, 1
      %s231 = scalar_select %p230, %s20, 1
      %p232 = scmp.lt.s32.totalorder %s229, 3
      %s233 = scalar_select %p232, %s229, 3
      %s234 = smul.addr %s231, 16
      %s235 = sadd.s32 %s233, %s234
      %s236 = smul.addr %s235, 8
      %s237 = scalar_lea.vmem %s5, %s236
      %s238 = sadd.s32 %s20, %s21
      %p239 = scmp.lt.s32.totalorder %s238, 1
      %s240 = scalar_select %p239, %s238, 1
      %s241 = smul.addr %s240, 6
      %s242 = smul.addr %s241, 2
      %s243 = scalar_lea.vmem %s0, %s242
      %s244 = sadd.s32 %s20, %s21
      %s245 = smul.u32 4, %s21
      %p246 = scmp.lt.s32.totalorder %s20, 1
      %s247 = scalar_select %p246, %s20, 1
      %p248 = scmp.lt.s32.totalorder %s245, 3
      %s249 = scalar_select %p248, %s245, 3
      %s250 = smul.addr %s247, 16
      %s251 = sadd.s32 %s249, %s250
      %s252 = smul.addr %s251, 8
      %s253 = scalar_lea.vmem %s5, %s252
      %s254 = smul.u32 4, %s21
      %v256 = vld [vmem:[%s243] sm:$0xff]
      %v257 = vld [vmem:[%s2] sm:$0x11]
      %v258 = vld [vmem:[%s2 + $0x8] sm:$0x11]
      %v261 = vunpack.c.l.b16 %v257
      %v262 = vunpack.c.h.b16 %v257
      %v263 = vunpack.c.l.b16 %v258
      %v264 = vunpack.c.h.b16 %v258
      %v265 = vpack.c.b16 %v261, %v261
      %v266 = vpack.c.b16 %v262, %v262
      %v267 = vpack.c.b16 %v263, %v263
      %v268 = vpack.c.b16 %v264, %v264
      %v270 = vpack.i.b16 %v265, %v265
      %v272 = vlaneseq
      %v273 = vshrl.u32 %v272, 7
      %v274 = vsub.s32 0, %v273
      %v275 = vrot.slane %v270, %v274
      %v277 = vpack.i.b16 %v266, %v266
      %v279 = vlaneseq
      %v280 = vshrl.u32 %v279, 7
      %v281 = vsub.s32 0, %v280
      %v282 = vrot.slane %v277, %v281
      %v284 = vpack.i.b16 %v267, %v267
      %v286 = vlaneseq
      %v287 = vshrl.u32 %v286, 7
      %v288 = vsub.s32 0, %v287
      %v289 = vrot.slane %v284, %v288
      %v291 = vpack.i.b16 %v268, %v268
      %v293 = vlaneseq
      %v294 = vshrl.u32 %v293, 7
      %v295 = vsub.s32 0, %v294
      %v296 = vrot.slane %v291, %v295
      %v301 = vcombine.low %v275, %v282
      %v302 = vcombine.low %v289, %v296
      %v304 = vunpack.c.l.s4 1983009808
      %v305 = vunpack.c.0.s8 %v304
      %v306 = vlaneseq
      %v307 = vshrl.u32 %v306, 7
      %v308 = vsub.s32 %v305, %v307
      %v309 = vrot.slane %v301, %v308
      %v311 = vunpack.c.l.s4 1983009808
      %v312 = vunpack.c.0.s8 %v311
      %v313 = vlaneseq
      %v314 = vshrl.u32 %v313, 7
      %v315 = vsub.s32 %v312, %v314
      %v316 = vrot.slane %v302, %v315
      %v317 = vcombine.low %v309, %v316
      %v319 = vmul.bf16 %v256, %v317
      %v320 = vld [vmem:[%s243 + $0x8] sm:$0x3]
      %v321 = vshrl.u32 %v265, 16
      %v322 = vpack.i.b16 %v321, %v321
      %v324 = vlaneseq
      %v325 = vshrl.u32 %v324, 7
      %v326 = vsub.s32 0, %v325
      %v327 = vrot.slane %v322, %v326
      %v328 = vshrl.u32 %v266, 16
      %v329 = vpack.i.b16 %v328, %v328
      %v331 = vlaneseq
      %v332 = vshrl.u32 %v331, 7
      %v333 = vsub.s32 0, %v332
      %v334 = vrot.slane %v329, %v333
      %v335 = vshrl.u32 %v267, 16
      %v336 = vpack.i.b16 %v335, %v335
      %v338 = vlaneseq
      %v339 = vshrl.u32 %v338, 7
      %v340 = vsub.s32 0, %v339
      %v341 = vrot.slane %v336, %v340
      %v342 = vshrl.u32 %v268, 16
      %v343 = vpack.i.b16 %v342, %v342
      %v345 = vlaneseq
      %v346 = vshrl.u32 %v345, 7
      %v347 = vsub.s32 0, %v346
      %v348 = vrot.slane %v343, %v347
      %v353 = vcombine.low %v327, %v334
      %v354 = vcombine.low %v341, %v348
      %v356 = vunpack.c.l.s4 1983009808
      %v357 = vunpack.c.0.s8 %v356
      %v358 = vlaneseq
      %v359 = vshrl.u32 %v358, 7
      %v360 = vsub.s32 %v357, %v359
      %v361 = vrot.slane %v353, %v360
      %v363 = vunpack.c.l.s4 1983009808
      %v364 = vunpack.c.0.s8 %v363
      %v365 = vlaneseq
      %v366 = vshrl.u32 %v365, 7
      %v367 = vsub.s32 %v364, %v366
      %v368 = vrot.slane %v354, %v367
      %v369 = vcombine.low %v361, %v368
      %370 = vrot.lane.b32.xlu0 %v369, 1
      %v371 = vpop.permute.xlu0 %370
      %v372 = vrot.slane %v371, 6
      %vm373 = vcmask 7168
      %v374 = vsel %vm373, %v372, %v371
      %v377 = vmul.bf16 %v256, %v374
      %v378 = vmul.bf16 %v320, %v372
      %v379 = vld [vmem:[%s2] sm:$0x22]
      %v380 = vld [vmem:[%s2 + $0x8] sm:$0x22]
      %v383 = vunpack.c.l.b16 %v379
      %v384 = vunpack.c.h.b16 %v379
      %v385 = vunpack.c.l.b16 %v380
      %v386 = vunpack.c.h.b16 %v380
      %v387 = vpack.c.b16 %v383, %v383
      %v388 = vpack.c.b16 %v384, %v384
      %v389 = vpack.c.b16 %v385, %v385
      %v390 = vpack.c.b16 %v386, %v386
      %v392 = vpack.i.b16 %v387, %v387
      %v394 = vlaneseq
      %v395 = vshrl.u32 %v394, 7
      %v396 = vsub.s32 1, %v395
      %v397 = vrot.slane %v392, %v396
      %v399 = vpack.i.b16 %v388, %v388
      %v401 = vlaneseq
      %v402 = vshrl.u32 %v401, 7
      %v403 = vsub.s32 1, %v402
      %v404 = vrot.slane %v399, %v403
      %v406 = vpack.i.b16 %v389, %v389
      %v408 = vlaneseq
      %v409 = vshrl.u32 %v408, 7
      %v410 = vsub.s32 1, %v409
      %v411 = vrot.slane %v406, %v410
      %v413 = vpack.i.b16 %v390, %v390
      %v415 = vlaneseq
      %v416 = vshrl.u32 %v415, 7
      %v417 = vsub.s32 1, %v416
      %v418 = vrot.slane %v413, %v417
      %v423 = vcombine.low %v397, %v404
      %v424 = vcombine.low %v411, %v418
      %v426 = vunpack.c.l.s4 1983009808
      %v427 = vunpack.c.0.s8 %v426
      %v428 = vlaneseq
      %v429 = vshrl.u32 %v428, 7
      %v430 = vsub.s32 %v427, %v429
      %v431 = vrot.slane %v423, %v430
      %v433 = vunpack.c.l.s4 1983009808
      %v434 = vunpack.c.0.s8 %v433
      %v435 = vlaneseq
      %v436 = vshrl.u32 %v435, 7
      %v437 = vsub.s32 %v434, %v436
      %v438 = vrot.slane %v424, %v437
      %v439 = vcombine.low %v431, %v438
      %440 = vrot.lane.b32.xlu0 %v439, 2
      %v441 = vpop.permute.xlu0 %440
      %v442 = vrot.slane %v441, 6
      %vm443 = vcmask 15360
      %v444 = vsel %vm443, %v442, %v441
      %v447 = vmul.bf16 %v256, %v444
      %v448 = vmul.bf16 %v320, %v442
      %v449 = vshrl.u32 %v387, 16
      %v450 = vpack.i.b16 %v449, %v449
      %v452 = vlaneseq
      %v453 = vshrl.u32 %v452, 7
      %v454 = vsub.s32 1, %v453
      %v455 = vrot.slane %v450, %v454
      %v456 = vshrl.u32 %v388, 16
      %v457 = vpack.i.b16 %v456, %v456
      %v459 = vlaneseq
      %v460 = vshrl.u32 %v459, 7
      %v461 = vsub.s32 1, %v460
      %v462 = vrot.slane %v457, %v461
      %v463 = vshrl.u32 %v389, 16
      %v464 = vpack.i.b16 %v463, %v463
      %v466 = vlaneseq
      %v467 = vshrl.u32 %v466, 7
      %v468 = vsub.s32 1, %v467
      %v469 = vrot.slane %v464, %v468
      %v470 = vshrl.u32 %v390, 16
      %v471 = vpack.i.b16 %v470, %v470
      %v473 = vlaneseq
      %v474 = vshrl.u32 %v473, 7
      %v475 = vsub.s32 1, %v474
      %v476 = vrot.slane %v471, %v475
      %v481 = vcombine.low %v455, %v462
      %v482 = vcombine.low %v469, %v476
      %v484 = vunpack.c.l.s4 1983009808
      %v485 = vunpack.c.0.s8 %v484
      %v486 = vlaneseq
      %v487 = vshrl.u32 %v486, 7
      %v488 = vsub.s32 %v485, %v487
      %v489 = vrot.slane %v481, %v488
      %v491 = vunpack.c.l.s4 1983009808
      %v492 = vunpack.c.0.s8 %v491
      %v493 = vlaneseq
      %v494 = vshrl.u32 %v493, 7
      %v495 = vsub.s32 %v492, %v494
      %v496 = vrot.slane %v482, %v495
      %v497 = vcombine.low %v489, %v496
      %498 = vrot.lane.b32.xlu0 %v497, 8
      %v499 = vpop.permute.xlu0 %498
      %v500 = vrot.slane %v499, 6
      %vm501 = vcmask 64512
      %v502 = vsel %vm501, %v500, %v499
      %v505 = vmul.bf16 %v256, %v502
      %v506 = vmul.bf16 %v320, %v500
      %v507 = vld [vmem:[%s2] sm:$0x44]
      %v508 = vld [vmem:[%s2 + $0x8] sm:$0x44]
      %v511 = vunpack.c.l.b16 %v507
      %v512 = vunpack.c.h.b16 %v507
      %v513 = vunpack.c.l.b16 %v508
      %v514 = vunpack.c.h.b16 %v508
      %v515 = vpack.c.b16 %v511, %v511
      %v516 = vpack.c.b16 %v512, %v512
      %v517 = vpack.c.b16 %v513, %v513
      %v518 = vpack.c.b16 %v514, %v514
      %v520 = vshrl.u32 %v515, 16
      %v521 = vpack.i.b16 %v520, %v520
      %v523 = vlaneseq
      %v524 = vshrl.u32 %v523, 7
      %v525 = vsub.s32 2, %v524
      %v526 = vrot.slane %v521, %v525
      %v528 = vshrl.u32 %v516, 16
      %v529 = vpack.i.b16 %v528, %v528
      %v531 = vlaneseq
      %v532 = vshrl.u32 %v531, 7
      %v533 = vsub.s32 2, %v532
      %v534 = vrot.slane %v529, %v533
      %v536 = vshrl.u32 %v517, 16
      %v537 = vpack.i.b16 %v536, %v536
      %v539 = vlaneseq
      %v540 = vshrl.u32 %v539, 7
      %v541 = vsub.s32 2, %v540
      %v542 = vrot.slane %v537, %v541
      %v544 = vshrl.u32 %v518, 16
      %v545 = vpack.i.b16 %v544, %v544
      %v547 = vlaneseq
      %v548 = vshrl.u32 %v547, 7
      %v549 = vsub.s32 2, %v548
      %v550 = vrot.slane %v545, %v549
      %v555 = vcombine.low %v526, %v534
      %v556 = vcombine.low %v542, %v550
      %v558 = vunpack.c.l.s4 1983009808
      %v559 = vunpack.c.0.s8 %v558
      %v560 = vlaneseq
      %v561 = vshrl.u32 %v560, 7
      %v562 = vsub.s32 %v559, %v561
      %v563 = vrot.slane %v555, %v562
      %v565 = vunpack.c.l.s4 1983009808
      %v566 = vunpack.c.0.s8 %v565
      %v567 = vlaneseq
      %v568 = vshrl.u32 %v567, 7
      %v569 = vsub.s32 %v566, %v568
      %v570 = vrot.slane %v556, %v569
      %v571 = vcombine.low %v563, %v570
      %572 = vrot.lane.b32.xlu0 %v571, 10
      %v573 = vpop.permute.xlu0 %572
      %v574 = vrot.slane %v573, 6
      %vm575 = vcmask 80896
      %v576 = vsel %vm575, %v574, %v573
      %v579 = vmul.bf16 %v256, %v576
      %v580 = vmul.bf16 %v320, %v574
      %v581 = vld [vmem:[%s2] sm:$0x88]
      %v582 = vld [vmem:[%s2 + $0x8] sm:$0x88]
      %v585 = vunpack.c.l.b16 %v581
      %v586 = vunpack.c.h.b16 %v581
      %v587 = vunpack.c.l.b16 %v582
      %v588 = vunpack.c.h.b16 %v582
      %v589 = vpack.c.b16 %v585, %v585
      %v590 = vpack.c.b16 %v586, %v586
      %v591 = vpack.c.b16 %v587, %v587
      %v592 = vpack.c.b16 %v588, %v588
      %v594 = vpack.i.b16 %v589, %v589
      %v596 = vlaneseq
      %v597 = vshrl.u32 %v596, 7
      %v598 = vsub.s32 3, %v597
      %v599 = vrot.slane %v594, %v598
      %v601 = vpack.i.b16 %v590, %v590
      %v603 = vlaneseq
      %v604 = vshrl.u32 %v603, 7
      %v605 = vsub.s32 3, %v604
      %v606 = vrot.slane %v601, %v605
      %v608 = vpack.i.b16 %v591, %v591
      %v610 = vlaneseq
      %v611 = vshrl.u32 %v610, 7
      %v612 = vsub.s32 3, %v611
      %v613 = vrot.slane %v608, %v612
      %v615 = vpack.i.b16 %v592, %v592
      %v617 = vlaneseq
      %v618 = vshrl.u32 %v617, 7
      %v619 = vsub.s32 3, %v618
      %v620 = vrot.slane %v615, %v619
      %v625 = vcombine.low %v599, %v606
      %v626 = vcombine.low %v613, %v620
      %v628 = vunpack.c.l.s4 1983009808
      %v629 = vunpack.c.0.s8 %v628
      %v630 = vlaneseq
      %v631 = vshrl.u32 %v630, 7
      %v632 = vsub.s32 %v629, %v631
      %v633 = vrot.slane %v625, %v632
      %v635 = vunpack.c.l.s4 1983009808
      %v636 = vunpack.c.0.s8 %v635
      %v637 = vlaneseq
      %v638 = vshrl.u32 %v637, 7
      %v639 = vsub.s32 %v636, %v638
      %v640 = vrot.slane %v626, %v639
      %v641 = vcombine.low %v633, %v640
      %642 = vrot.lane.b32.xlu0 %v641, 16
      %v643 = vpop.permute.xlu0 %642
      %v644 = vrot.slane %v643, 6
      %vm645 = vcmask 130048
      %v646 = vsel %vm645, %v644, %v643
      %v649 = vmul.bf16 %v256, %v646
      %v650 = vmul.bf16 %v320, %v644
      %v651 = vshrl.u32 %v589, 16
      %v652 = vpack.i.b16 %v651, %v651
      %v654 = vlaneseq
      %v655 = vshrl.u32 %v654, 7
      %v656 = vsub.s32 3, %v655
      %v657 = vrot.slane %v652, %v656
      %v658 = vshrl.u32 %v590, 16
      %v659 = vpack.i.b16 %v658, %v658
      %v661 = vlaneseq
      %v662 = vshrl.u32 %v661, 7
      %v663 = vsub.s32 3, %v662
      %v664 = vrot.slane %v659, %v663
      %v665 = vshrl.u32 %v591, 16
      %v666 = vpack.i.b16 %v665, %v665
      %v668 = vlaneseq
      %v669 = vshrl.u32 %v668, 7
      %v670 = vsub.s32 3, %v669
      %v671 = vrot.slane %v666, %v670
      %v672 = vshrl.u32 %v592, 16
      %v673 = vpack.i.b16 %v672, %v672
      %v675 = vlaneseq
      %v676 = vshrl.u32 %v675, 7
      %v677 = vsub.s32 3, %v676
      %v678 = vrot.slane %v673, %v677
      %v683 = vcombine.low %v657, %v664
      %v684 = vcombine.low %v671, %v678
      %v686 = vunpack.c.l.s4 1983009808
      %v687 = vunpack.c.0.s8 %v686
      %v688 = vlaneseq
      %v689 = vshrl.u32 %v688, 7
      %v690 = vsub.s32 %v687, %v689
      %v691 = vrot.slane %v683, %v690
      %v693 = vunpack.c.l.s4 1983009808
      %v694 = vunpack.c.0.s8 %v693
      %v695 = vlaneseq
      %v696 = vshrl.u32 %v695, 7
      %v697 = vsub.s32 %v694, %v696
      %v698 = vrot.slane %v684, %v697
      %v699 = vcombine.low %v691, %v698
      %700 = vrot.lane.b32.xlu0 %v699, 17
      %v701 = vpop.permute.xlu0 %700
      %v702 = vrot.slane %v701, 6
      %vm703 = vcmask 138240
      %v704 = vsel %vm703, %v702, %v701
      %v707 = vmul.bf16 %v256, %v704
      %v708 = vmul.bf16 %v320, %v702
      %v709 = vld [vmem:[%s2 + $0x10] sm:$0x11]
      %v710 = vld [vmem:[%s2 + $0x18] sm:$0x11]
      %v713 = vunpack.c.l.b16 %v709
      %v714 = vunpack.c.h.b16 %v709
      %v715 = vunpack.c.l.b16 %v710
      %v716 = vunpack.c.h.b16 %v710
      %v717 = vpack.c.b16 %v713, %v713
      %v718 = vpack.c.b16 %v714, %v714
      %v719 = vpack.c.b16 %v715, %v715
      %v720 = vpack.c.b16 %v716, %v716
      %v722 = vpack.i.b16 %v717, %v717
      %v724 = vlaneseq
      %v725 = vshrl.u32 %v724, 7
      %v726 = vsub.s32 0, %v725
      %v727 = vrot.slane %v722, %v726
      %v729 = vpack.i.b16 %v718, %v718
      %v731 = vlaneseq
      %v732 = vshrl.u32 %v731, 7
      %v733 = vsub.s32 0, %v732
      %v734 = vrot.slane %v729, %v733
      %v736 = vpack.i.b16 %v719, %v719
      %v738 = vlaneseq
      %v739 = vshrl.u32 %v738, 7
      %v740 = vsub.s32 0, %v739
      %v741 = vrot.slane %v736, %v740
      %v743 = vpack.i.b16 %v720, %v720
      %v745 = vlaneseq
      %v746 = vshrl.u32 %v745, 7
      %v747 = vsub.s32 0, %v746
      %v748 = vrot.slane %v743, %v747
      %v753 = vcombine.low %v727, %v734
      %v754 = vcombine.low %v741, %v748
      %v756 = vunpack.c.l.s4 1983009808
      %v757 = vunpack.c.0.s8 %v756
      %v758 = vlaneseq
      %v759 = vshrl.u32 %v758, 7
      %v760 = vsub.s32 %v757, %v759
      %v761 = vrot.slane %v753, %v760
      %v763 = vunpack.c.l.s4 1983009808
      %v764 = vunpack.c.0.s8 %v763
      %v765 = vlaneseq
      %v766 = vshrl.u32 %v765, 7
      %v767 = vsub.s32 %v764, %v766
      %v768 = vrot.slane %v754, %v767
      %v769 = vcombine.low %v761, %v768
      %770 = vrot.lane.b32.xlu0 %v769, 18
      %v771 = vpop.permute.xlu0 %770
      %v772 = vrot.slane %v771, 6
      %vm773 = vcmask 146432
      %v774 = vsel %vm773, %v772, %v771
      %v777 = vmul.bf16 %v256, %v774
      %v778 = vmul.bf16 %v320, %v772
      %779 = vrot.lane.b32.xlu0 %v317, 64
      %v780 = vpop.permute.xlu0 %779
      %v781 = vrot.slane %v780, 6
      %vm782 = vcmask 523264
      %v783 = vsel %vm782, %v781, %v780
      %v786 = vmul.bf16 %v256, %v783
      %v787 = vmul.bf16 %v320, %v781
      %788 = vrot.lane.b32.xlu0 %v369, 65
      %v789 = vpop.permute.xlu0 %788
      %v790 = vrot.slane %v789, 6
      %vm791 = vcmask 531456
      %v792 = vsel %vm791, %v790, %v789
      %v795 = vmul.bf16 %v256, %v792
      %v796 = vmul.bf16 %v320, %v790
      %797 = vrot.lane.b32.xlu0 %v439, 66
      %v798 = vpop.permute.xlu0 %797
      %v799 = vrot.slane %v798, 6
      %vm800 = vcmask 539648
      %v801 = vsel %vm800, %v799, %v798
      %v804 = vmul.bf16 %v256, %v801
      %v805 = vmul.bf16 %v320, %v799
      %806 = vrot.lane.b32.xlu0 %v497, 72
      %v807 = vpop.permute.xlu0 %806
      %v808 = vrot.slane %v807, 6
      %vm809 = vcmask 588800
      %v810 = vsel %vm809, %v808, %v807
      %v813 = vmul.bf16 %v256, %v810
      %v814 = vmul.bf16 %v320, %v808
      %815 = vrot.lane.b32.xlu0 %v571, 74
      %v816 = vpop.permute.xlu0 %815
      %v817 = vrot.slane %v816, 6
      %vm818 = vcmask 605184
      %v819 = vsel %vm818, %v817, %v816
      %v822 = vmul.bf16 %v256, %v819
      %v823 = vmul.bf16 %v320, %v817
      %824 = vrot.lane.b32.xlu0 %v641, 80
      %v825 = vpop.permute.xlu0 %824
      %v826 = vrot.slane %v825, 6
      %vm827 = vcmask 654336
      %v828 = vsel %vm827, %v826, %v825
      %v831 = vmul.bf16 %v256, %v828
      %v832 = vmul.bf16 %v320, %v826
      %833 = vrot.lane.b32.xlu0 %v699, 81
      %v834 = vpop.permute.xlu0 %833
      %v835 = vrot.slane %v834, 6
      %vm836 = vcmask 662528
      %v837 = vsel %vm836, %v835, %v834
      %v840 = vmul.bf16 %v256, %v837
      %v841 = vmul.bf16 %v320, %v835
      %842 = vrot.lane.b32.xlu0 %v769, 82
      %v843 = vpop.permute.xlu0 %842
      %v844 = vrot.slane %v843, 6
      %vm845 = vcmask 670720
      %v846 = vsel %vm845, %v844, %v843
      %v849 = vmul.bf16 %v256, %v846
      %v850 = vmul.bf16 %v320, %v844
      %v851 = vld [vmem:[%s243 + $0x2] sm:$0xff]
      %v852 = vmul.bf16 %v851, %v317
      %v853 = vld [vmem:[%s243 + $0xa] sm:$0x3]
      %v854 = vmul.bf16 %v851, %v374
      %v855 = vmul.bf16 %v853, %v372
      %v856 = vmul.bf16 %v851, %v444
      %v857 = vmul.bf16 %v853, %v442
      %v858 = vmul.bf16 %v851, %v502
      %v859 = vmul.bf16 %v853, %v500
      %v860 = vmul.bf16 %v851, %v576
      %v861 = vmul.bf16 %v853, %v574
      %v862 = vmul.bf16 %v851, %v646
      %v863 = vmul.bf16 %v853, %v644
      %v864 = vmul.bf16 %v851, %v704
      %v865 = vmul.bf16 %v853, %v702
      %v866 = vmul.bf16 %v851, %v774
      %v867 = vmul.bf16 %v853, %v772
      %v869 = vcombine.high %v319, %v319
      %v871 = vunpack.c.l.s4 1983009808
      %v872 = vunpack.c.0.s8 %v871
      %v873 = vlaneseq
      %v874 = vshrl.u32 %v873, 7
      %v875 = vsub.s32 %v872, %v874
      %v876 = vrot.slane %v319, %v875
      %v878 = vunpack.c.l.s4 1983009808
      %v879 = vunpack.c.0.s8 %v878
      %v880 = vlaneseq
      %v881 = vshrl.u32 %v880, 7
      %v882 = vsub.s32 %v879, %v881
      %v883 = vrot.slane %v869, %v882
      %v884 = vcombine.high %v876, %v876
      %v885 = vcombine.high %v883, %v883
      %v888 = vcombine.low %v377, %v377
      %v890 = vunpack.c.l.s4 1983009808
      %v891 = vunpack.c.0.s8 %v890
      %v892 = vlaneseq
      %v893 = vshrl.u32 %v892, 7
      %v894 = vsub.s32 %v891, %v893
      %v895 = vrot.slane %v888, %v894
      %v897 = vunpack.c.l.s4 1983009808
      %v898 = vunpack.c.0.s8 %v897
      %v899 = vlaneseq
      %v900 = vshrl.u32 %v899, 7
      %v901 = vsub.s32 %v898, %v900
      %v902 = vrot.slane %v377, %v901
      %v903 = vcombine.high %v895, %v895
      %v904 = vcombine.high %v902, %v902
      %v905 = vcombine.low %v378, %v378
      %v907 = vunpack.c.l.s4 1983009808
      %v908 = vunpack.c.0.s8 %v907
      %v909 = vlaneseq
      %v910 = vshrl.u32 %v909, 7
      %v911 = vsub.s32 %v908, %v910
      %v912 = vrot.slane %v905, %v911
      %913 = vrot.lane.b32.xlu0 %v895, 127
      %v914 = vpop.permute.xlu0 %913
      %915 = vrot.lane.b32.xlu0 %v903, 127
      %v916 = vpop.permute.xlu0 %915
      %917 = vrot.lane.b32.xlu0 %v902, 127
      %v918 = vpop.permute.xlu0 %917
      %919 = vrot.lane.b32.xlu0 %v904, 127
      %v920 = vpop.permute.xlu0 %919
      %921 = vrot.lane.b32.xlu0 %v912, 127
      %v922 = vpop.permute.xlu0 %921
      %vm923 = vcmask 1039360
      %v924 = vsel %vm923, %v914, %v916
      %v925 = vsel %vm923, %v916, %v918
      %v926 = vsel %vm923, %v918, %v920
      %v927 = vsel %vm923, %v920, %v922
      %v930 = vcombine.high %v447, %v447
      %v932 = vunpack.c.l.s4 1983009808
      %v933 = vunpack.c.0.s8 %v932
      %v934 = vlaneseq
      %v935 = vshrl.u32 %v934, 7
      %v936 = vsub.s32 %v933, %v935
      %v937 = vrot.slane %v447, %v936
      %v939 = vunpack.c.l.s4 1983009808
      %v940 = vunpack.c.0.s8 %v939
      %v941 = vlaneseq
      %v942 = vshrl.u32 %v941, 7
      %v943 = vsub.s32 %v940, %v942
      %v944 = vrot.slane %v930, %v943
      %v945 = vcombine.low %v937, %v937
      %v946 = vcombine.low %v944, %v944
      %v948 = vunpack.c.l.s4 1983009808
      %v949 = vunpack.c.0.s8 %v948
      %v950 = vlaneseq
      %v951 = vshrl.u32 %v950, 7
      %v952 = vsub.s32 %v949, %v951
      %v953 = vrot.slane %v448, %v952
      %v954 = vcombine.low %v953, %v953
      %955 = vrot.lane.b32.xlu0 %v945, 126
      %v956 = vpop.permute.xlu0 %955
      %957 = vrot.lane.b32.xlu0 %v937, 126
      %v958 = vpop.permute.xlu0 %957
      %959 = vrot.lane.b32.xlu0 %v946, 126
      %v960 = vpop.permute.xlu0 %959
      %961 = vrot.lane.b32.xlu0 %v944, 126
      %v962 = vpop.permute.xlu0 %961
      %963 = vrot.lane.b32.xlu0 %v954, 126
      %v964 = vpop.permute.xlu0 %963
      %vm965 = vcmask 1031168
      %v966 = vsel %vm965, %v956, %v958
      %v967 = vsel %vm965, %v958, %v960
      %v968 = vsel %vm965, %v960, %v962
      %v969 = vsel %vm965, %v962, %v964
      %v972 = vcombine.low %v505, %v505
      %v974 = vunpack.c.l.s4 1983009808
      %v975 = vunpack.c.0.s8 %v974
      %v976 = vlaneseq
      %v977 = vshrl.u32 %v976, 7
      %v978 = vsub.s32 %v975, %v977
      %v979 = vrot.slane %v972, %v978
      %v981 = vunpack.c.l.s4 1983009808
      %v982 = vunpack.c.0.s8 %v981
      %v983 = vlaneseq
      %v984 = vshrl.u32 %v983, 7
      %v985 = vsub.s32 %v982, %v984
      %v986 = vrot.slane %v505, %v985
      %v987 = vcombine.low %v979, %v979
      %v988 = vcombine.low %v986, %v986
      %v989 = vcombine.low %v506, %v506
      %v991 = vunpack.c.l.s4 1983009808
      %v992 = vunpack.c.0.s8 %v991
      %v993 = vlaneseq
      %v994 = vshrl.u32 %v993, 7
      %v995 = vsub.s32 %v992, %v994
      %v996 = vrot.slane %v989, %v995
      %v997 = vcombine.low %v996, %v996
      %998 = vrot.lane.b32.xlu0 %v987, 120
      %v999 = vpop.permute.xlu0 %998
      %1000 = vrot.lane.b32.xlu0 %v979, 120
      %v1001 = vpop.permute.xlu0 %1000
      %1002 = vrot.lane.b32.xlu0 %v988, 120
      %v1003 = vpop.permute.xlu0 %1002
      %1004 = vrot.lane.b32.xlu0 %v986, 120
      %v1005 = vpop.permute.xlu0 %1004
      %1006 = vrot.lane.b32.xlu0 %v997, 120
      %v1007 = vpop.permute.xlu0 %1006
      %vm1008 = vcmask 982016
      %v1009 = vsel %vm1008, %v999, %v1001
      %v1010 = vsel %vm1008, %v1001, %v1003
      %v1011 = vsel %vm1008, %v1003, %v1005
      %v1012 = vsel %vm1008, %v1005, %v1007
      %v1015 = vcombine.high %v256, %v256
      %v1017 = vunpack.c.l.s4 1983009808
      %v1018 = vunpack.c.0.s8 %v1017
      %v1019 = vlaneseq
      %v1020 = vshrl.u32 %v1019, 7
      %v1021 = vsub.s32 %v1018, %v1020
      %v1022 = vrot.slane %v256, %v1021
      %v1024 = vunpack.c.l.s4 1983009808
      %v1025 = vunpack.c.0.s8 %v1024
      %v1026 = vlaneseq
      %v1027 = vshrl.u32 %v1026, 7
      %v1028 = vsub.s32 %v1025, %v1027
      %v1029 = vrot.slane %v1015, %v1028
      %v1030 = vcombine.high %v1022, %v1022
      %v1031 = vcombine.high %v1029, %v1029
      %v1033 = vunpack.c.l.s4 1983009808
      %v1034 = vunpack.c.0.s8 %v1033
      %v1035 = vlaneseq
      %v1036 = vshrl.u32 %v1035, 7
      %v1037 = vsub.s32 %v1034, %v1036
      %v1038 = vrot.slane %v320, %v1037
      %1039 = vrot.lane.b32.xlu0 %v1022, 119
      %v1040 = vpop.permute.xlu0 %1039
      %1041 = vrot.lane.b32.xlu0 %v1030, 119
      %v1042 = vpop.permute.xlu0 %1041
      %1043 = vrot.lane.b32.xlu0 %v1029, 119
      %v1044 = vpop.permute.xlu0 %1043
      %1045 = vrot.lane.b32.xlu0 %v1031, 119
      %v1046 = vpop.permute.xlu0 %1045
      %1047 = vrot.lane.b32.xlu0 %v1038, 119
      %v1048 = vpop.permute.xlu0 %1047
      %vm1049 = vcmask 973824
      %v1050 = vsel %vm1049, %v1040, %v1042
      %v1051 = vsel %vm1049, %v1042, %v1044
      %v1052 = vsel %vm1049, %v1044, %v1046
      %v1053 = vsel %vm1049, %v1046, %v1048
      %v1056 = vcombine.low %v579, %v579
      %v1058 = vunpack.c.l.s4 1983009808
      %v1059 = vunpack.c.0.s8 %v1058
      %v1060 = vlaneseq
      %v1061 = vshrl.u32 %v1060, 7
      %v1062 = vsub.s32 %v1059, %v1061
      %v1063 = vrot.slane %v1056, %v1062
      %v1065 = vunpack.c.l.s4 1983009808
      %v1066 = vunpack.c.0.s8 %v1065
      %v1067 = vlaneseq
      %v1068 = vshrl.u32 %v1067, 7
      %v1069 = vsub.s32 %v1066, %v1068
      %v1070 = vrot.slane %v579, %v1069
      %v1071 = vcombine.high %v1063, %v1063
      %v1072 = vcombine.high %v1070, %v1070
      %v1073 = vcombine.low %v580, %v580
      %v1075 = vunpack.c.l.s4 1983009808
      %v1076 = vunpack.c.0.s8 %v1075
      %v1077 = vlaneseq
      %v1078 = vshrl.u32 %v1077, 7
      %v1079 = vsub.s32 %v1076, %v1078
      %v1080 = vrot.slane %v1073, %v1079
      %1081 = vrot.lane.b32.xlu0 %v1063, 118
      %v1082 = vpop.permute.xlu0 %1081
      %1083 = vrot.lane.b32.xlu0 %v1071, 118
      %v1084 = vpop.permute.xlu0 %1083
      %1085 = vrot.lane.b32.xlu0 %v1070, 118
      %v1086 = vpop.permute.xlu0 %1085
      %1087 = vrot.lane.b32.xlu0 %v1072, 118
      %v1088 = vpop.permute.xlu0 %1087
      %1089 = vrot.lane.b32.xlu0 %v1080, 118
      %v1090 = vpop.permute.xlu0 %1089
      %vm1091 = vcmask 965632
      %v1092 = vsel %vm1091, %v1082, %v1084
      %v1093 = vsel %vm1091, %v1084, %v1086
      %v1094 = vsel %vm1091, %v1086, %v1088
      %v1095 = vsel %vm1091, %v1088, %v1090
      %v1098 = vcombine.high %v649, %v649
      %v1100 = vunpack.c.l.s4 1983009808
      %v1101 = vunpack.c.0.s8 %v1100
      %v1102 = vlaneseq
      %v1103 = vshrl.u32 %v1102, 7
      %v1104 = vsub.s32 %v1101, %v1103
      %v1105 = vrot.slane %v649, %v1104
      %v1107 = vunpack.c.l.s4 1983009808
      %v1108 = vunpack.c.0.s8 %v1107
      %v1109 = vlaneseq
      %v1110 = vshrl.u32 %v1109, 7
      %v1111 = vsub.s32 %v1108, %v1110
      %v1112 = vrot.slane %v1098, %v1111
      %v1113 = vcombine.low %v1105, %v1105
      %v1114 = vcombine.low %v1112, %v1112
      %v1116 = vunpack.c.l.s4 1983009808
      %v1117 = vunpack.c.0.s8 %v1116
      %v1118 = vlaneseq
      %v1119 = vshrl.u32 %v1118, 7
      %v1120 = vsub.s32 %v1117, %v1119
      %v1121 = vrot.slane %v650, %v1120
      %v1122 = vcombine.low %v1121, %v1121
      %1123 = vrot.lane.b32.xlu0 %v1113, 112
      %v1124 = vpop.permute.xlu0 %1123
      %1125 = vrot.lane.b32.xlu0 %v1105, 112
      %v1126 = vpop.permute.xlu0 %1125
      %1127 = vrot.lane.b32.xlu0 %v1114, 112
      %v1128 = vpop.permute.xlu0 %1127
      %1129 = vrot.lane.b32.xlu0 %v1112, 112
      %v1130 = vpop.permute.xlu0 %1129
      %1131 = vrot.lane.b32.xlu0 %v1122, 112
      %v1132 = vpop.permute.xlu0 %1131
      %vm1133 = vcmask 916480
      %v1134 = vsel %vm1133, %v1124, %v1126
      %v1135 = vsel %vm1133, %v1126, %v1128
      %v1136 = vsel %vm1133, %v1128, %v1130
      %v1137 = vsel %vm1133, %v1130, %v1132
      %v1140 = vcombine.low %v707, %v707
      %v1142 = vunpack.c.l.s4 1983009808
      %v1143 = vunpack.c.0.s8 %v1142
      %v1144 = vlaneseq
      %v1145 = vshrl.u32 %v1144, 7
      %v1146 = vsub.s32 %v1143, %v1145
      %v1147 = vrot.slane %v1140, %v1146
      %v1149 = vunpack.c.l.s4 1983009808
      %v1150 = vunpack.c.0.s8 %v1149
      %v1151 = vlaneseq
      %v1152 = vshrl.u32 %v1151, 7
      %v1153 = vsub.s32 %v1150, %v1152
      %v1154 = vrot.slane %v707, %v1153
      %v1155 = vcombine.low %v1147, %v1147
      %v1156 = vcombine.low %v1154, %v1154
      %v1157 = vcombine.low %v708, %v708
      %v1159 = vunpack.c.l.s4 1983009808
      %v1160 = vunpack.c.0.s8 %v1159
      %v1161 = vlaneseq
      %v1162 = vshrl.u32 %v1161, 7
      %v1163 = vsub.s32 %v1160, %v1162
      %v1164 = vrot.slane %v1157, %v1163
      %v1165 = vcombine.low %v1164, %v1164
      %1166 = vrot.lane.b32.xlu0 %v1155, 111
      %v1167 = vpop.permute.xlu0 %1166
      %1168 = vrot.lane.b32.xlu0 %v1147, 111
      %v1169 = vpop.permute.xlu0 %1168
      %1170 = vrot.lane.b32.xlu0 %v1156, 111
      %v1171 = vpop.permute.xlu0 %1170
      %1172 = vrot.lane.b32.xlu0 %v1154, 111
      %v1173 = vpop.permute.xlu0 %1172
      %1174 = vrot.lane.b32.xlu0 %v1165, 111
      %v1175 = vpop.permute.xlu0 %1174
      %vm1176 = vcmask 908288
      %v1177 = vsel %vm1176, %v1167, %v1169
      %v1178 = vsel %vm1176, %v1169, %v1171
      %v1179 = vsel %vm1176, %v1171, %v1173
      %v1180 = vsel %vm1176, %v1173, %v1175
      %v1183 = vcombine.high %v777, %v777
      %v1185 = vunpack.c.l.s4 1983009808
      %v1186 = vunpack.c.0.s8 %v1185
      %v1187 = vlaneseq
      %v1188 = vshrl.u32 %v1187, 7
      %v1189 = vsub.s32 %v1186, %v1188
      %v1190 = vrot.slane %v777, %v1189
      %v1192 = vunpack.c.l.s4 1983009808
      %v1193 = vunpack.c.0.s8 %v1192
      %v1194 = vlaneseq
      %v1195 = vshrl.u32 %v1194, 7
      %v1196 = vsub.s32 %v1193, %v1195
      %v1197 = vrot.slane %v1183, %v1196
      %v1198 = vcombine.high %v1190, %v1190
      %v1199 = vcombine.high %v1197, %v1197
      %v1201 = vunpack.c.l.s4 1983009808
      %v1202 = vunpack.c.0.s8 %v1201
      %v1203 = vlaneseq
      %v1204 = vshrl.u32 %v1203, 7
      %v1205 = vsub.s32 %v1202, %v1204
      %v1206 = vrot.slane %v778, %v1205
      %1207 = vrot.lane.b32.xlu0 %v1190, 110
      %v1208 = vpop.permute.xlu0 %1207
      %1209 = vrot.lane.b32.xlu0 %v1198, 110
      %v1210 = vpop.permute.xlu0 %1209
      %1211 = vrot.lane.b32.xlu0 %v1197, 110
      %v1212 = vpop.permute.xlu0 %1211
      %1213 = vrot.lane.b32.xlu0 %v1199, 110
      %v1214 = vpop.permute.xlu0 %1213
      %1215 = vrot.lane.b32.xlu0 %v1206, 110
      %v1216 = vpop.permute.xlu0 %1215
      %vm1217 = vcmask 900096
      %v1218 = vsel %vm1217, %v1208, %v1210
      %v1219 = vsel %vm1217, %v1210, %v1212
      %v1220 = vsel %vm1217, %v1212, %v1214
      %v1221 = vsel %vm1217, %v1214, %v1216
      %v1224 = vcombine.low %v786, %v786
      %v1226 = vunpack.c.l.s4 1983009808
      %v1227 = vunpack.c.0.s8 %v1226
      %v1228 = vlaneseq
      %v1229 = vshrl.u32 %v1228, 7
      %v1230 = vsub.s32 %v1227, %v1229
      %v1231 = vrot.slane %v1224, %v1230
      %v1233 = vunpack.c.l.s4 1983009808
      %v1234 = vunpack.c.0.s8 %v1233
      %v1235 = vlaneseq
      %v1236 = vshrl.u32 %v1235, 7
      %v1237 = vsub.s32 %v1234, %v1236
      %v1238 = vrot.slane %v786, %v1237
      %v1239 = vcombine.high %v1231, %v1231
      %v1240 = vcombine.high %v1238, %v1238
      %v1241 = vcombine.low %v787, %v787
      %v1243 = vunpack.c.l.s4 1983009808
      %v1244 = vunpack.c.0.s8 %v1243
      %v1245 = vlaneseq
      %v1246 = vshrl.u32 %v1245, 7
      %v1247 = vsub.s32 %v1244, %v1246
      %v1248 = vrot.slane %v1241, %v1247
      %1249 = vrot.lane.b32.xlu0 %v1231, 64
      %v1250 = vpop.permute.xlu0 %1249
      %1251 = vrot.lane.b32.xlu0 %v1239, 64
      %v1252 = vpop.permute.xlu0 %1251
      %1253 = vrot.lane.b32.xlu0 %v1238, 64
      %v1254 = vpop.permute.xlu0 %1253
      %1255 = vrot.lane.b32.xlu0 %v1240, 64
      %v1256 = vpop.permute.xlu0 %1255
      %1257 = vrot.lane.b32.xlu0 %v1248, 64
      %v1258 = vpop.permute.xlu0 %1257
      %v1259 = vsel %vm782, %v1250, %v1252
      %v1260 = vsel %vm782, %v1252, %v1254
      %v1261 = vsel %vm782, %v1254, %v1256
      %v1262 = vsel %vm782, %v1256, %v1258
      %v1265 = vcombine.high %v795, %v795
      %v1267 = vunpack.c.l.s4 1983009808
      %v1268 = vunpack.c.0.s8 %v1267
      %v1269 = vlaneseq
      %v1270 = vshrl.u32 %v1269, 7
      %v1271 = vsub.s32 %v1268, %v1270
      %v1272 = vrot.slane %v795, %v1271
      %v1274 = vunpack.c.l.s4 1983009808
      %v1275 = vunpack.c.0.s8 %v1274
      %v1276 = vlaneseq
      %v1277 = vshrl.u32 %v1276, 7
      %v1278 = vsub.s32 %v1275, %v1277
      %v1279 = vrot.slane %v1265, %v1278
      %v1280 = vcombine.low %v1272, %v1272
      %v1281 = vcombine.low %v1279, %v1279
      %v1283 = vunpack.c.l.s4 1983009808
      %v1284 = vunpack.c.0.s8 %v1283
      %v1285 = vlaneseq
      %v1286 = vshrl.u32 %v1285, 7
      %v1287 = vsub.s32 %v1284, %v1286
      %v1288 = vrot.slane %v796, %v1287
      %v1289 = vcombine.low %v1288, %v1288
      %1290 = vrot.lane.b32.xlu0 %v1280, 63
      %v1291 = vpop.permute.xlu0 %1290
      %1292 = vrot.lane.b32.xlu0 %v1272, 63
      %v1293 = vpop.permute.xlu0 %1292
      %1294 = vrot.lane.b32.xlu0 %v1281, 63
      %v1295 = vpop.permute.xlu0 %1294
      %1296 = vrot.lane.b32.xlu0 %v1279, 63
      %v1297 = vpop.permute.xlu0 %1296
      %1298 = vrot.lane.b32.xlu0 %v1289, 63
      %v1299 = vpop.permute.xlu0 %1298
      %vm1300 = vcmask 515072
      %v1301 = vsel %vm1300, %v1291, %v1293
      %v1302 = vsel %vm1300, %v1293, %v1295
      %v1303 = vsel %vm1300, %v1295, %v1297
      %v1304 = vsel %vm1300, %v1297, %v1299
      %v1307 = vcombine.low %v804, %v804
      %v1309 = vunpack.c.l.s4 1983009808
      %v1310 = vunpack.c.0.s8 %v1309
      %v1311 = vlaneseq
      %v1312 = vshrl.u32 %v1311, 7
      %v1313 = vsub.s32 %v1310, %v1312
      %v1314 = vrot.slane %v1307, %v1313
      %v1316 = vunpack.c.l.s4 1983009808
      %v1317 = vunpack.c.0.s8 %v1316
      %v1318 = vlaneseq
      %v1319 = vshrl.u32 %v1318, 7
      %v1320 = vsub.s32 %v1317, %v1319
      %v1321 = vrot.slane %v804, %v1320
      %v1322 = vcombine.low %v1314, %v1314
      %v1323 = vcombine.low %v1321, %v1321
      %v1324 = vcombine.low %v805, %v805
      %v1326 = vunpack.c.l.s4 1983009808
      %v1327 = vunpack.c.0.s8 %v1326
      %v1328 = vlaneseq
      %v1329 = vshrl.u32 %v1328, 7
      %v1330 = vsub.s32 %v1327, %v1329
      %v1331 = vrot.slane %v1324, %v1330
      %v1332 = vcombine.low %v1331, %v1331
      %1333 = vrot.lane.b32.xlu0 %v1322, 62
      %v1334 = vpop.permute.xlu0 %1333
      %1335 = vrot.lane.b32.xlu0 %v1314, 62
      %v1336 = vpop.permute.xlu0 %1335
      %1337 = vrot.lane.b32.xlu0 %v1323, 62
      %v1338 = vpop.permute.xlu0 %1337
      %1339 = vrot.lane.b32.xlu0 %v1321, 62
      %v1340 = vpop.permute.xlu0 %1339
      %1341 = vrot.lane.b32.xlu0 %v1332, 62
      %v1342 = vpop.permute.xlu0 %1341
      %vm1343 = vcmask 506880
      %v1344 = vsel %vm1343, %v1334, %v1336
      %v1345 = vsel %vm1343, %v1336, %v1338
      %v1346 = vsel %vm1343, %v1338, %v1340
      %v1347 = vsel %vm1343, %v1340, %v1342
      %v1350 = vcombine.high %v813, %v813
      %v1352 = vunpack.c.l.s4 1983009808
      %v1353 = vunpack.c.0.s8 %v1352
      %v1354 = vlaneseq
      %v1355 = vshrl.u32 %v1354, 7
      %v1356 = vsub.s32 %v1353, %v1355
      %v1357 = vrot.slane %v813, %v1356
      %v1359 = vunpack.c.l.s4 1983009808
      %v1360 = vunpack.c.0.s8 %v1359
      %v1361 = vlaneseq
      %v1362 = vshrl.u32 %v1361, 7
      %v1363 = vsub.s32 %v1360, %v1362
      %v1364 = vrot.slane %v1350, %v1363
      %v1365 = vcombine.high %v1357, %v1357
      %v1366 = vcombine.high %v1364, %v1364
      %v1368 = vunpack.c.l.s4 1983009808
      %v1369 = vunpack.c.0.s8 %v1368
      %v1370 = vlaneseq
      %v1371 = vshrl.u32 %v1370, 7
      %v1372 = vsub.s32 %v1369, %v1371
      %v1373 = vrot.slane %v814, %v1372
      %1374 = vrot.lane.b32.xlu0 %v1357, 56
      %v1375 = vpop.permute.xlu0 %1374
      %1376 = vrot.lane.b32.xlu0 %v1365, 56
      %v1377 = vpop.permute.xlu0 %1376
      %1378 = vrot.lane.b32.xlu0 %v1364, 56
      %v1379 = vpop.permute.xlu0 %1378
      %1380 = vrot.lane.b32.xlu0 %v1366, 56
      %v1381 = vpop.permute.xlu0 %1380
      %1382 = vrot.lane.b32.xlu0 %v1373, 56
      %v1383 = vpop.permute.xlu0 %1382
      %vm1384 = vcmask 457728
      %v1385 = vsel %vm1384, %v1375, %v1377
      %v1386 = vsel %vm1384, %v1377, %v1379
      %v1387 = vsel %vm1384, %v1379, %v1381
      %v1388 = vsel %vm1384, %v1381, %v1383
      %v1389 = vcombine.low %v256, %v256
      %v1391 = vunpack.c.l.s4 1983009808
      %v1392 = vunpack.c.0.s8 %v1391
      %v1393 = vlaneseq
      %v1394 = vshrl.u32 %v1393, 7
      %v1395 = vsub.s32 %v1392, %v1394
      %v1396 = vrot.slane %v1389, %v1395
      %v1397 = vcombine.high %v1396, %v1396
      %v1398 = vcombine.low %v320, %v320
      %v1400 = vunpack.c.l.s4 1983009808
      %v1401 = vunpack.c.0.s8 %v1400
      %v1402 = vlaneseq
      %v1403 = vshrl.u32 %v1402, 7
      %v1404 = vsub.s32 %v1401, %v1403
      %v1405 = vrot.slane %v1398, %v1404
      %1406 = vrot.lane.b32.xlu0 %v1396, 55
      %v1407 = vpop.permute.xlu0 %1406
      %1408 = vrot.lane.b32.xlu0 %v1397, 55
      %v1409 = vpop.permute.xlu0 %1408
      %1410 = vrot.lane.b32.xlu0 %v1022, 55
      %v1411 = vpop.permute.xlu0 %1410
      %1412 = vrot.lane.b32.xlu0 %v1030, 55
      %v1413 = vpop.permute.xlu0 %1412
      %1414 = vrot.lane.b32.xlu0 %v1405, 55
      %v1415 = vpop.permute.xlu0 %1414
      %vm1416 = vcmask 449536
      %v1417 = vsel %vm1416, %v1407, %v1409
      %v1418 = vsel %vm1416, %v1409, %v1411
      %v1419 = vsel %vm1416, %v1411, %v1413
      %v1420 = vsel %vm1416, %v1413, %v1415
      %v1423 = vcombine.high %v822, %v822
      %v1425 = vunpack.c.l.s4 1983009808
      %v1426 = vunpack.c.0.s8 %v1425
      %v1427 = vlaneseq
      %v1428 = vshrl.u32 %v1427, 7
      %v1429 = vsub.s32 %v1426, %v1428
      %v1430 = vrot.slane %v822, %v1429
      %v1432 = vunpack.c.l.s4 1983009808
      %v1433 = vunpack.c.0.s8 %v1432
      %v1434 = vlaneseq
      %v1435 = vshrl.u32 %v1434, 7
      %v1436 = vsub.s32 %v1433, %v1435
      %v1437 = vrot.slane %v1423, %v1436
      %v1438 = vcombine.low %v1430, %v1430
      %v1439 = vcombine.low %v1437, %v1437
      %v1441 = vunpack.c.l.s4 1983009808
      %v1442 = vunpack.c.0.s8 %v1441
      %v1443 = vlaneseq
      %v1444 = vshrl.u32 %v1443, 7
      %v1445 = vsub.s32 %v1442, %v1444
      %v1446 = vrot.slane %v823, %v1445
      %v1447 = vcombine.low %v1446, %v1446
      %1448 = vrot.lane.b32.xlu0 %v1438, 54
      %v1449 = vpop.permute.xlu0 %1448
      %1450 = vrot.lane.b32.xlu0 %v1430, 54
      %v1451 = vpop.permute.xlu0 %1450
      %1452 = vrot.lane.b32.xlu0 %v1439, 54
      %v1453 = vpop.permute.xlu0 %1452
      %1454 = vrot.lane.b32.xlu0 %v1437, 54
      %v1455 = vpop.permute.xlu0 %1454
      %1456 = vrot.lane.b32.xlu0 %v1447, 54
      %v1457 = vpop.permute.xlu0 %1456
      %vm1458 = vcmask 441344
      %v1459 = vsel %vm1458, %v1449, %v1451
      %v1460 = vsel %vm1458, %v1451, %v1453
      %v1461 = vsel %vm1458, %v1453, %v1455
      %v1462 = vsel %vm1458, %v1455, %v1457
      %v1465 = vcombine.low %v831, %v831
      %v1467 = vunpack.c.l.s4 1983009808
      %v1468 = vunpack.c.0.s8 %v1467
      %v1469 = vlaneseq
      %v1470 = vshrl.u32 %v1469, 7
      %v1471 = vsub.s32 %v1468, %v1470
      %v1472 = vrot.slane %v1465, %v1471
      %v1474 = vunpack.c.l.s4 1983009808
      %v1475 = vunpack.c.0.s8 %v1474
      %v1476 = vlaneseq
      %v1477 = vshrl.u32 %v1476, 7
      %v1478 = vsub.s32 %v1475, %v1477
      %v1479 = vrot.slane %v831, %v1478
      %v1480 = vcombine.low %v1472, %v1472
      %v1481 = vcombine.low %v1479, %v1479
      %v1482 = vcombine.low %v832, %v832
      %v1484 = vunpack.c.l.s4 1983009808
      %v1485 = vunpack.c.0.s8 %v1484
      %v1486 = vlaneseq
      %v1487 = vshrl.u32 %v1486, 7
      %v1488 = vsub.s32 %v1485, %v1487
      %v1489 = vrot.slane %v1482, %v1488
      %v1490 = vcombine.low %v1489, %v1489
      %1491 = vrot.lane.b32.xlu0 %v1480, 48
      %v1492 = vpop.permute.xlu0 %1491
      %1493 = vrot.lane.b32.xlu0 %v1472, 48
      %v1494 = vpop.permute.xlu0 %1493
      %1495 = vrot.lane.b32.xlu0 %v1481, 48
      %v1496 = vpop.permute.xlu0 %1495
      %1497 = vrot.lane.b32.xlu0 %v1479, 48
      %v1498 = vpop.permute.xlu0 %1497
      %1499 = vrot.lane.b32.xlu0 %v1490, 48
      %v1500 = vpop.permute.xlu0 %1499
      %vm1501 = vcmask 392192
      %v1502 = vsel %vm1501, %v1492, %v1494
      %v1503 = vsel %vm1501, %v1494, %v1496
      %v1504 = vsel %vm1501, %v1496, %v1498
      %v1505 = vsel %vm1501, %v1498, %v1500
      %vm1506 = vcmask 1041408
      %v1509 = vsel %vm1506, %v876, %v924
      %v1512 = vsel %vm1506, %v884, %v925
      %v1515 = vsel %vm1506, %v883, %v926
      %v1518 = vsel %vm1506, %v885, %v927
      %vm1519 = vcmask 1043456
      %v1521 = vsel %vm1519, %v1509, %v966
      %v1523 = vsel %vm1519, %v1512, %v967
      %v1525 = vsel %vm1519, %v1515, %v968
      %v1527 = vsel %vm1519, %v1518, %v969
      %vm1528 = vcmask 1045504
      %v1530 = vsel %vm1528, %v1521, %v1009
      %v1533 = vsel %vm1528, %v1523, %v1010
      %v1536 = vsel %vm1528, %v1525, %v1011
      %v1539 = vsel %vm1528, %v1527, %v1012
      %v1543 = vsel %vm1506, %v1050, %v1092
      %v1546 = vsel %vm1506, %v1051, %v1093
      %v1549 = vsel %vm1506, %v1052, %v1094
      %v1552 = vsel %vm1506, %v1053, %v1095
      %v1554 = vsel %vm1519, %v1543, %v1134
      %v1556 = vsel %vm1519, %v1546, %v1135
      %v1558 = vsel %vm1519, %v1549, %v1136
      %v1560 = vsel %vm1519, %v1552, %v1137
      %v1562 = vsel %vm1528, %v1554, %v1177
      %v1565 = vsel %vm1528, %v1556, %v1178
      %v1568 = vsel %vm1528, %v1558, %v1179
      %v1571 = vsel %vm1528, %v1560, %v1180
      %v1575 = vsel %vm1506, %v1218, %v1259
      %v1578 = vsel %vm1506, %v1219, %v1260
      %v1581 = vsel %vm1506, %v1220, %v1261
      %v1584 = vsel %vm1506, %v1221, %v1262
      %v1586 = vsel %vm1519, %v1575, %v1301
      %v1588 = vsel %vm1519, %v1578, %v1302
      %v1590 = vsel %vm1519, %v1581, %v1303
      %v1592 = vsel %vm1519, %v1584, %v1304
      %v1594 = vsel %vm1528, %v1586, %v1344
      %v1597 = vsel %vm1528, %v1588, %v1345
      %v1600 = vsel %vm1528, %v1590, %v1346
      %v1603 = vsel %vm1528, %v1592, %v1347
      %v1607 = vsel %vm1506, %v1385, %v1417
      %v1610 = vsel %vm1506, %v1386, %v1418
      %v1613 = vsel %vm1506, %v1387, %v1419
      %v1616 = vsel %vm1506, %v1388, %v1420
      %v1618 = vsel %vm1519, %v1607, %v1459
      %v1620 = vsel %vm1519, %v1610, %v1460
      %v1622 = vsel %vm1519, %v1613, %v1461
      %v1624 = vsel %vm1519, %v1616, %v1462
      %v1626 = vsel %vm1528, %v1618, %v1502
      %v1629 = vsel %vm1528, %v1620, %v1503
      %v1632 = vsel %vm1528, %v1622, %v1504
      %v1635 = vsel %vm1528, %v1624, %v1505
      %v1639 = vcombine.high %v840, %v840
      %v1641 = vunpack.c.l.s4 1983009808
      %v1642 = vunpack.c.0.s8 %v1641
      %v1643 = vlaneseq
      %v1644 = vshrl.u32 %v1643, 7
      %v1645 = vsub.s32 %v1642, %v1644
      %v1646 = vrot.slane %v840, %v1645
      %v1648 = vunpack.c.l.s4 1983009808
      %v1649 = vunpack.c.0.s8 %v1648
      %v1650 = vlaneseq
      %v1651 = vshrl.u32 %v1650, 7
      %v1652 = vsub.s32 %v1649, %v1651
      %v1653 = vrot.slane %v1639, %v1652
      %v1654 = vcombine.high %v1646, %v1646
      %v1655 = vcombine.high %v1653, %v1653
      %v1657 = vunpack.c.l.s4 1983009808
      %v1658 = vunpack.c.0.s8 %v1657
      %v1659 = vlaneseq
      %v1660 = vshrl.u32 %v1659, 7
      %v1661 = vsub.s32 %v1658, %v1660
      %v1662 = vrot.slane %v841, %v1661
      %v1665 = vcombine.low %v849, %v849
      %v1667 = vunpack.c.l.s4 1983009808
      %v1668 = vunpack.c.0.s8 %v1667
      %v1669 = vlaneseq
      %v1670 = vshrl.u32 %v1669, 7
      %v1671 = vsub.s32 %v1668, %v1670
      %v1672 = vrot.slane %v1665, %v1671
      %v1674 = vunpack.c.l.s4 1983009808
      %v1675 = vunpack.c.0.s8 %v1674
      %v1676 = vlaneseq
      %v1677 = vshrl.u32 %v1676, 7
      %v1678 = vsub.s32 %v1675, %v1677
      %v1679 = vrot.slane %v849, %v1678
      %v1680 = vcombine.high %v1672, %v1672
      %v1681 = vcombine.high %v1679, %v1679
      %v1682 = vcombine.low %v850, %v850
      %v1684 = vunpack.c.l.s4 1983009808
      %v1685 = vunpack.c.0.s8 %v1684
      %v1686 = vlaneseq
      %v1687 = vshrl.u32 %v1686, 7
      %v1688 = vsub.s32 %v1685, %v1687
      %v1689 = vrot.slane %v1682, %v1688
      %1690 = vrot.lane.b32.xlu0 %v1672, 127
      %v1691 = vpop.permute.xlu0 %1690
      %1692 = vrot.lane.b32.xlu0 %v1680, 127
      %v1693 = vpop.permute.xlu0 %1692
      %1694 = vrot.lane.b32.xlu0 %v1679, 127
      %v1695 = vpop.permute.xlu0 %1694
      %1696 = vrot.lane.b32.xlu0 %v1681, 127
      %v1697 = vpop.permute.xlu0 %1696
      %1698 = vrot.lane.b32.xlu0 %v1689, 127
      %v1699 = vpop.permute.xlu0 %1698
      %v1700 = vsel %vm923, %v1691, %v1693
      %v1701 = vsel %vm923, %v1693, %v1695
      %v1702 = vsel %vm923, %v1695, %v1697
      %v1703 = vsel %vm923, %v1697, %v1699
      %v1705 = vcombine.high %v852, %v852
      %v1707 = vunpack.c.l.s4 1983009808
      %v1708 = vunpack.c.0.s8 %v1707
      %v1709 = vlaneseq
      %v1710 = vshrl.u32 %v1709, 7
      %v1711 = vsub.s32 %v1708, %v1710
      %v1712 = vrot.slane %v852, %v1711
      %v1714 = vunpack.c.l.s4 1983009808
      %v1715 = vunpack.c.0.s8 %v1714
      %v1716 = vlaneseq
      %v1717 = vshrl.u32 %v1716, 7
      %v1718 = vsub.s32 %v1715, %v1717
      %v1719 = vrot.slane %v1705, %v1718
      %v1720 = vcombine.low %v1712, %v1712
      %v1721 = vcombine.low %v1719, %v1719
      %1722 = vrot.lane.b32.xlu0 %v1720, 81
      %v1723 = vpop.permute.xlu0 %1722
      %1724 = vrot.lane.b32.xlu0 %v1712, 81
      %v1725 = vpop.permute.xlu0 %1724
      %1726 = vrot.lane.b32.xlu0 %v1721, 81
      %v1727 = vpop.permute.xlu0 %1726
      %1728 = vrot.lane.b32.xlu0 %v1719, 81
      %v1729 = vpop.permute.xlu0 %1728
      %v1730 = vsel %vm836, %v1723, %v1725
      %v1731 = vsel %vm836, %v1725, %v1727
      %v1732 = vsel %vm836, %v1727, %v1729
      %v1735 = vcombine.low %v854, %v854
      %v1737 = vunpack.c.l.s4 1983009808
      %v1738 = vunpack.c.0.s8 %v1737
      %v1739 = vlaneseq
      %v1740 = vshrl.u32 %v1739, 7
      %v1741 = vsub.s32 %v1738, %v1740
      %v1742 = vrot.slane %v1735, %v1741
      %v1744 = vunpack.c.l.s4 1983009808
      %v1745 = vunpack.c.0.s8 %v1744
      %v1746 = vlaneseq
      %v1747 = vshrl.u32 %v1746, 7
      %v1748 = vsub.s32 %v1745, %v1747
      %v1749 = vrot.slane %v854, %v1748
      %v1750 = vcombine.low %v1742, %v1742
      %v1751 = vcombine.low %v1749, %v1749
      %v1752 = vcombine.low %v855, %v855
      %v1754 = vunpack.c.l.s4 1983009808
      %v1755 = vunpack.c.0.s8 %v1754
      %v1756 = vlaneseq
      %v1757 = vshrl.u32 %v1756, 7
      %v1758 = vsub.s32 %v1755, %v1757
      %v1759 = vrot.slane %v1752, %v1758
      %v1760 = vcombine.low %v1759, %v1759
      %1761 = vrot.lane.b32.xlu0 %v1750, 80
      %v1762 = vpop.permute.xlu0 %1761
      %1763 = vrot.lane.b32.xlu0 %v1742, 80
      %v1764 = vpop.permute.xlu0 %1763
      %1765 = vrot.lane.b32.xlu0 %v1751, 80
      %v1766 = vpop.permute.xlu0 %1765
      %1767 = vrot.lane.b32.xlu0 %v1749, 80
      %v1768 = vpop.permute.xlu0 %1767
      %1769 = vrot.lane.b32.xlu0 %v1760, 80
      %v1770 = vpop.permute.xlu0 %1769
      %v1771 = vsel %vm827, %v1762, %v1764
      %v1772 = vsel %vm827, %v1764, %v1766
      %v1773 = vsel %vm827, %v1766, %v1768
      %v1774 = vsel %vm827, %v1768, %v1770
      %v1777 = vcombine.high %v856, %v856
      %v1779 = vunpack.c.l.s4 1983009808
      %v1780 = vunpack.c.0.s8 %v1779
      %v1781 = vlaneseq
      %v1782 = vshrl.u32 %v1781, 7
      %v1783 = vsub.s32 %v1780, %v1782
      %v1784 = vrot.slane %v856, %v1783
      %v1786 = vunpack.c.l.s4 1983009808
      %v1787 = vunpack.c.0.s8 %v1786
      %v1788 = vlaneseq
      %v1789 = vshrl.u32 %v1788, 7
      %v1790 = vsub.s32 %v1787, %v1789
      %v1791 = vrot.slane %v1777, %v1790
      %v1792 = vcombine.high %v1784, %v1784
      %v1793 = vcombine.high %v1791, %v1791
      %v1795 = vunpack.c.l.s4 1983009808
      %v1796 = vunpack.c.0.s8 %v1795
      %v1797 = vlaneseq
      %v1798 = vshrl.u32 %v1797, 7
      %v1799 = vsub.s32 %v1796, %v1798
      %v1800 = vrot.slane %v857, %v1799
      %1801 = vrot.lane.b32.xlu0 %v1784, 79
      %v1802 = vpop.permute.xlu0 %1801
      %1803 = vrot.lane.b32.xlu0 %v1792, 79
      %v1804 = vpop.permute.xlu0 %1803
      %1805 = vrot.lane.b32.xlu0 %v1791, 79
      %v1806 = vpop.permute.xlu0 %1805
      %1807 = vrot.lane.b32.xlu0 %v1793, 79
      %v1808 = vpop.permute.xlu0 %1807
      %1809 = vrot.lane.b32.xlu0 %v1800, 79
      %v1810 = vpop.permute.xlu0 %1809
      %vm1811 = vcmask 646144
      %v1812 = vsel %vm1811, %v1802, %v1804
      %v1813 = vsel %vm1811, %v1804, %v1806
      %v1814 = vsel %vm1811, %v1806, %v1808
      %v1815 = vsel %vm1811, %v1808, %v1810
      %v1818 = vcombine.low %v858, %v858
      %v1820 = vunpack.c.l.s4 1983009808
      %v1821 = vunpack.c.0.s8 %v1820
      %v1822 = vlaneseq
      %v1823 = vshrl.u32 %v1822, 7
      %v1824 = vsub.s32 %v1821, %v1823
      %v1825 = vrot.slane %v1818, %v1824
      %v1827 = vunpack.c.l.s4 1983009808
      %v1828 = vunpack.c.0.s8 %v1827
      %v1829 = vlaneseq
      %v1830 = vshrl.u32 %v1829, 7
      %v1831 = vsub.s32 %v1828, %v1830
      %v1832 = vrot.slane %v858, %v1831
      %v1833 = vcombine.high %v1825, %v1825
      %v1834 = vcombine.high %v1832, %v1832
      %v1835 = vcombine.low %v859, %v859
      %v1837 = vunpack.c.l.s4 1983009808
      %v1838 = vunpack.c.0.s8 %v1837
      %v1839 = vlaneseq
      %v1840 = vshrl.u32 %v1839, 7
      %v1841 = vsub.s32 %v1838, %v1840
      %v1842 = vrot.slane %v1835, %v1841
      %1843 = vrot.lane.b32.xlu0 %v1825, 73
      %v1844 = vpop.permute.xlu0 %1843
      %1845 = vrot.lane.b32.xlu0 %v1833, 73
      %v1846 = vpop.permute.xlu0 %1845
      %1847 = vrot.lane.b32.xlu0 %v1832, 73
      %v1848 = vpop.permute.xlu0 %1847
      %1849 = vrot.lane.b32.xlu0 %v1834, 73
      %v1850 = vpop.permute.xlu0 %1849
      %1851 = vrot.lane.b32.xlu0 %v1842, 73
      %v1852 = vpop.permute.xlu0 %1851
      %vm1853 = vcmask 596992
      %v1854 = vsel %vm1853, %v1844, %v1846
      %v1855 = vsel %vm1853, %v1846, %v1848
      %v1856 = vsel %vm1853, %v1848, %v1850
      %v1857 = vsel %vm1853, %v1850, %v1852
      %v1860 = vcombine.high %v851, %v851
      %v1862 = vunpack.c.l.s4 1983009808
      %v1863 = vunpack.c.0.s8 %v1862
      %v1864 = vlaneseq
      %v1865 = vshrl.u32 %v1864, 7
      %v1866 = vsub.s32 %v1863, %v1865
      %v1867 = vrot.slane %v851, %v1866
      %v1869 = vunpack.c.l.s4 1983009808
      %v1870 = vunpack.c.0.s8 %v1869
      %v1871 = vlaneseq
      %v1872 = vshrl.u32 %v1871, 7
      %v1873 = vsub.s32 %v1870, %v1872
      %v1874 = vrot.slane %v1860, %v1873
      %v1875 = vcombine.low %v1867, %v1867
      %v1876 = vcombine.low %v1874, %v1874
      %v1878 = vunpack.c.l.s4 1983009808
      %v1879 = vunpack.c.0.s8 %v1878
      %v1880 = vlaneseq
      %v1881 = vshrl.u32 %v1880, 7
      %v1882 = vsub.s32 %v1879, %v1881
      %v1883 = vrot.slane %v853, %v1882
      %v1884 = vcombine.low %v1883, %v1883
      %1885 = vrot.lane.b32.xlu0 %v1875, 72
      %v1886 = vpop.permute.xlu0 %1885
      %1887 = vrot.lane.b32.xlu0 %v1867, 72
      %v1888 = vpop.permute.xlu0 %1887
      %1889 = vrot.lane.b32.xlu0 %v1876, 72
      %v1890 = vpop.permute.xlu0 %1889
      %1891 = vrot.lane.b32.xlu0 %v1874, 72
      %v1892 = vpop.permute.xlu0 %1891
      %1893 = vrot.lane.b32.xlu0 %v1884, 72
      %v1894 = vpop.permute.xlu0 %1893
      %v1895 = vsel %vm809, %v1886, %v1888
      %v1896 = vsel %vm809, %v1888, %v1890
      %v1897 = vsel %vm809, %v1890, %v1892
      %v1898 = vsel %vm809, %v1892, %v1894
      %v1901 = vcombine.low %v860, %v860
      %v1903 = vunpack.c.l.s4 1983009808
      %v1904 = vunpack.c.0.s8 %v1903
      %v1905 = vlaneseq
      %v1906 = vshrl.u32 %v1905, 7
      %v1907 = vsub.s32 %v1904, %v1906
      %v1908 = vrot.slane %v1901, %v1907
      %v1910 = vunpack.c.l.s4 1983009808
      %v1911 = vunpack.c.0.s8 %v1910
      %v1912 = vlaneseq
      %v1913 = vshrl.u32 %v1912, 7
      %v1914 = vsub.s32 %v1911, %v1913
      %v1915 = vrot.slane %v860, %v1914
      %v1916 = vcombine.low %v1908, %v1908
      %v1917 = vcombine.low %v1915, %v1915
      %v1918 = vcombine.low %v861, %v861
      %v1920 = vunpack.c.l.s4 1983009808
      %v1921 = vunpack.c.0.s8 %v1920
      %v1922 = vlaneseq
      %v1923 = vshrl.u32 %v1922, 7
      %v1924 = vsub.s32 %v1921, %v1923
      %v1925 = vrot.slane %v1918, %v1924
      %v1926 = vcombine.low %v1925, %v1925
      %1927 = vrot.lane.b32.xlu0 %v1916, 71
      %v1928 = vpop.permute.xlu0 %1927
      %1929 = vrot.lane.b32.xlu0 %v1908, 71
      %v1930 = vpop.permute.xlu0 %1929
      %1931 = vrot.lane.b32.xlu0 %v1917, 71
      %v1932 = vpop.permute.xlu0 %1931
      %1933 = vrot.lane.b32.xlu0 %v1915, 71
      %v1934 = vpop.permute.xlu0 %1933
      %1935 = vrot.lane.b32.xlu0 %v1926, 71
      %v1936 = vpop.permute.xlu0 %1935
      %vm1937 = vcmask 580608
      %v1938 = vsel %vm1937, %v1928, %v1930
      %v1939 = vsel %vm1937, %v1930, %v1932
      %v1940 = vsel %vm1937, %v1932, %v1934
      %v1941 = vsel %vm1937, %v1934, %v1936
      %v1944 = vcombine.high %v862, %v862
      %v1946 = vunpack.c.l.s4 1983009808
      %v1947 = vunpack.c.0.s8 %v1946
      %v1948 = vlaneseq
      %v1949 = vshrl.u32 %v1948, 7
      %v1950 = vsub.s32 %v1947, %v1949
      %v1951 = vrot.slane %v862, %v1950
      %v1953 = vunpack.c.l.s4 1983009808
      %v1954 = vunpack.c.0.s8 %v1953
      %v1955 = vlaneseq
      %v1956 = vshrl.u32 %v1955, 7
      %v1957 = vsub.s32 %v1954, %v1956
      %v1958 = vrot.slane %v1944, %v1957
      %v1959 = vcombine.high %v1951, %v1951
      %v1960 = vcombine.high %v1958, %v1958
      %v1962 = vunpack.c.l.s4 1983009808
      %v1963 = vunpack.c.0.s8 %v1962
      %v1964 = vlaneseq
      %v1965 = vshrl.u32 %v1964, 7
      %v1966 = vsub.s32 %v1963, %v1965
      %v1967 = vrot.slane %v863, %v1966
      %1968 = vrot.lane.b32.xlu0 %v1951, 65
      %v1969 = vpop.permute.xlu0 %1968
      %1970 = vrot.lane.b32.xlu0 %v1959, 65
      %v1971 = vpop.permute.xlu0 %1970
      %1972 = vrot.lane.b32.xlu0 %v1958, 65
      %v1973 = vpop.permute.xlu0 %1972
      %1974 = vrot.lane.b32.xlu0 %v1960, 65
      %v1975 = vpop.permute.xlu0 %1974
      %1976 = vrot.lane.b32.xlu0 %v1967, 65
      %v1977 = vpop.permute.xlu0 %1976
      %v1978 = vsel %vm791, %v1969, %v1971
      %v1979 = vsel %vm791, %v1971, %v1973
      %v1980 = vsel %vm791, %v1973, %v1975
      %v1981 = vsel %vm791, %v1975, %v1977
      %v1984 = vcombine.low %v864, %v864
      %v1986 = vunpack.c.l.s4 1983009808
      %v1987 = vunpack.c.0.s8 %v1986
      %v1988 = vlaneseq
      %v1989 = vshrl.u32 %v1988, 7
      %v1990 = vsub.s32 %v1987, %v1989
      %v1991 = vrot.slane %v1984, %v1990
      %v1993 = vunpack.c.l.s4 1983009808
      %v1994 = vunpack.c.0.s8 %v1993
      %v1995 = vlaneseq
      %v1996 = vshrl.u32 %v1995, 7
      %v1997 = vsub.s32 %v1994, %v1996
      %v1998 = vrot.slane %v864, %v1997
      %v1999 = vcombine.high %v1991, %v1991
      %v2000 = vcombine.high %v1998, %v1998
      %v2001 = vcombine.low %v865, %v865
      %v2003 = vunpack.c.l.s4 1983009808
      %v2004 = vunpack.c.0.s8 %v2003
      %v2005 = vlaneseq
      %v2006 = vshrl.u32 %v2005, 7
      %v2007 = vsub.s32 %v2004, %v2006
      %v2008 = vrot.slane %v2001, %v2007
      %2009 = vrot.lane.b32.xlu0 %v1991, 64
      %v2010 = vpop.permute.xlu0 %2009
      %2011 = vrot.lane.b32.xlu0 %v1999, 64
      %v2012 = vpop.permute.xlu0 %2011
      %2013 = vrot.lane.b32.xlu0 %v1998, 64
      %v2014 = vpop.permute.xlu0 %2013
      %2015 = vrot.lane.b32.xlu0 %v2000, 64
      %v2016 = vpop.permute.xlu0 %2015
      %2017 = vrot.lane.b32.xlu0 %v2008, 64
      %v2018 = vpop.permute.xlu0 %2017
      %v2019 = vsel %vm782, %v2010, %v2012
      %v2020 = vsel %vm782, %v2012, %v2014
      %v2021 = vsel %vm782, %v2014, %v2016
      %v2022 = vsel %vm782, %v2016, %v2018
      %v2025 = vcombine.high %v866, %v866
      %v2027 = vunpack.c.l.s4 1983009808
      %v2028 = vunpack.c.0.s8 %v2027
      %v2029 = vlaneseq
      %v2030 = vshrl.u32 %v2029, 7
      %v2031 = vsub.s32 %v2028, %v2030
      %v2032 = vrot.slane %v866, %v2031
      %v2034 = vunpack.c.l.s4 1983009808
      %v2035 = vunpack.c.0.s8 %v2034
      %v2036 = vlaneseq
      %v2037 = vshrl.u32 %v2036, 7
      %v2038 = vsub.s32 %v2035, %v2037
      %v2039 = vrot.slane %v2025, %v2038
      %v2040 = vcombine.low %v2032, %v2032
      %v2041 = vcombine.low %v2039, %v2039
      %v2043 = vunpack.c.l.s4 1983009808
      %v2044 = vunpack.c.0.s8 %v2043
      %v2045 = vlaneseq
      %v2046 = vshrl.u32 %v2045, 7
      %v2047 = vsub.s32 %v2044, %v2046
      %v2048 = vrot.slane %v867, %v2047
      %v2049 = vcombine.low %v2048, %v2048
      %2050 = vrot.lane.b32.xlu0 %v2040, 63
      %v2051 = vpop.permute.xlu0 %2050
      %2052 = vrot.lane.b32.xlu0 %v2032, 63
      %v2053 = vpop.permute.xlu0 %2052
      %2054 = vrot.lane.b32.xlu0 %v2041, 63
      %v2055 = vpop.permute.xlu0 %2054
      %2056 = vrot.lane.b32.xlu0 %v2039, 63
      %v2057 = vpop.permute.xlu0 %2056
      %2058 = vrot.lane.b32.xlu0 %v2049, 63
      %v2059 = vpop.permute.xlu0 %2058
      %v2060 = vsel %vm1300, %v2051, %v2053
      %v2061 = vsel %vm1300, %v2053, %v2055
      %v2062 = vsel %vm1300, %v2055, %v2057
      %v2063 = vsel %vm1300, %v2057, %v2059
      %v2066 = vsel %vm1506, %v1646, %v1700
      %v2069 = vsel %vm1506, %v1654, %v1701
      %v2072 = vsel %vm1506, %v1653, %v1702
      %v2075 = vsel %vm1506, %v1655, %v1703
      %v2078 = vsel %vm1506, %v1662, %v1699
      %v2080 = vsel %vm1519, %v2066, %v1723
      %v2082 = vsel %vm1519, %v2069, %v1730
      %v2084 = vsel %vm1519, %v2072, %v1731
      %v2086 = vsel %vm1519, %v2075, %v1732
      %v2088 = vsel %vm1519, %v2078, %v1729
      %v2090 = vsel %vm1528, %v2080, %v1762
      %v2092 = vsel %vm1528, %v2082, %v1771
      %v2094 = vsel %vm1528, %v2084, %v1772
      %v2096 = vsel %vm1528, %v2086, %v1773
      %v2098 = vsel %vm1528, %v2088, %v1774
      %v2101 = vsel %vm1506, %v1802, %v1844
      %v2104 = vsel %vm1506, %v1812, %v1854
      %v2107 = vsel %vm1506, %v1813, %v1855
      %v2110 = vsel %vm1506, %v1814, %v1856
      %v2113 = vsel %vm1506, %v1815, %v1857
      %v2115 = vsel %vm1519, %v2101, %v1886
      %v2117 = vsel %vm1519, %v2104, %v1895
      %v2119 = vsel %vm1519, %v2107, %v1896
      %v2121 = vsel %vm1519, %v2110, %v1897
      %v2123 = vsel %vm1519, %v2113, %v1898
      %v2125 = vsel %vm1528, %v2115, %v1928
      %v2127 = vsel %vm1528, %v2117, %v1938
      %v2129 = vsel %vm1528, %v2119, %v1939
      %v2131 = vsel %vm1528, %v2121, %v1940
      %v2133 = vsel %vm1528, %v2123, %v1941
      %v2136 = vsel %vm1506, %v1969, %v2010
      %v2139 = vsel %vm1506, %v1978, %v2019
      %v2142 = vsel %vm1506, %v1979, %v2020
      %v2145 = vsel %vm1506, %v1980, %v2021
      %v2148 = vsel %vm1506, %v1981, %v2022
      %v2150 = vsel %vm1519, %v2136, %v2051
      %v2152 = vsel %vm1519, %v2139, %v2060
      %v2154 = vsel %vm1519, %v2142, %v2061
      %v2156 = vsel %vm1519, %v2145, %v2062
      %v2158 = vsel %vm1519, %v2148, %v2063
      %2174 = vrot.lane.b32.xlu0 %v2090, 47
      %v2175 = vpop.permute.xlu0 %2174
      %2176 = vrot.lane.b32.xlu0 %v2092, 47
      %v2177 = vpop.permute.xlu0 %2176
      %2178 = vrot.lane.b32.xlu0 %v2094, 47
      %v2179 = vpop.permute.xlu0 %2178
      %2180 = vrot.lane.b32.xlu0 %v2096, 47
      %v2181 = vpop.permute.xlu0 %2180
      %2182 = vrot.lane.b32.xlu0 %v2098, 47
      %v2183 = vpop.permute.xlu0 %2182
      %2184 = vrot.lane.b32.xlu0 %v2125, 47
      %v2185 = vpop.permute.xlu0 %2184
      %2186 = vrot.lane.b32.xlu0 %v2127, 47
      %v2187 = vpop.permute.xlu0 %2186
      %2188 = vrot.lane.b32.xlu0 %v2129, 47
      %v2189 = vpop.permute.xlu0 %2188
      %2190 = vrot.lane.b32.xlu0 %v2131, 47
      %v2191 = vpop.permute.xlu0 %2190
      %2192 = vrot.lane.b32.xlu0 %v2133, 47
      %v2193 = vpop.permute.xlu0 %2192
      %2194 = vrot.lane.b32.xlu0 %v2150, 47
      %v2195 = vpop.permute.xlu0 %2194
      %2196 = vrot.lane.b32.xlu0 %v2152, 47
      %v2197 = vpop.permute.xlu0 %2196
      %2198 = vrot.lane.b32.xlu0 %v2154, 47
      %v2199 = vpop.permute.xlu0 %2198
      %2200 = vrot.lane.b32.xlu0 %v2156, 47
      %v2201 = vpop.permute.xlu0 %2200
      %2202 = vrot.lane.b32.xlu0 %v2158, 47
      %v2203 = vpop.permute.xlu0 %2202
      %vm2204 = vcmask 384000
      %v2205 = vsel %vm2204, %v2175, %v2177
      %v2206 = vsel %vm2204, %v2177, %v2179
      %v2207 = vsel %vm2204, %v2179, %v2181
      %v2208 = vsel %vm2204, %v2181, %v2183
      %v2209 = vsel %vm2204, %v2185, %v2187
      %v2210 = vsel %vm2204, %v2187, %v2189
      %v2211 = vsel %vm2204, %v2189, %v2191
      %v2212 = vsel %vm2204, %v2191, %v2193
      %v2213 = vsel %vm2204, %v2195, %v2197
      %v2214 = vsel %vm2204, %v2197, %v2199
      %v2215 = vsel %vm2204, %v2199, %v2201
      %v2216 = vsel %vm2204, %v2201, %v2203
      %v2225 = vld [vmem:[%s1] sm:$0xf]
      %v2226 = vld [vmem:[%s1 + $0x4] sm:$0xf]
      %v2227 = vld [vmem:[%s1 + $0x8] sm:$0xf]
      %v2228 = vld [vmem:[%s1 + $0xc] sm:$0xf]
      %v2233 = vunpack.c.l.b16 %v2225
      %v2234 = vunpack.c.l.b16 %v2226
      %v2235 = vunpack.c.l.b16 %v2227
      %v2236 = vunpack.c.l.b16 %v2228
      %v2237 = vpack.c.b16 %v2234, %v2233
      %v2238 = vpack.c.b16 %v2236, %v2235
      %vm2239 = vcmask 883712
      %v2241 = vsel %vm2239, %v2237, 0
      %v2244 = vsel %vm2239, %v2238, 0
      %v2247 = vsel %vm1528, %v2213, 0
      %v2250 = vsel %vm1528, %v2214, 0
      %v2253 = vsel %vm1528, %v2215, 0
      %v2256 = vsel %vm1528, %v2216, 0
      %2258 = vmatprep.subr.bf16.mxu0 %v1533
      %2259 = vmatpush1.bf16.msra.mxu0 %v1530
      %2260 = vmatprep.subr.bf16.mxu0 %v1565
      %2261 = vmatpush1.bf16.msra.mxu0 %v1562
      %2262 = vmatprep.subr.bf16.mxu0 %v1597
      %2263 = vmatpush1.bf16.msra.mxu0 %v1594
      %2264 = vmatprep.subr.bf16.mxu0 %v1629
      %2265 = vmatpush1.bf16.msra.mxu0 %v1626
      %2266 = vmatprep.subr.bf16.mxu0 %v2206
      %2267 = vmatpush1.bf16.msra.mxu0 %v2205
      %2268 = vmatprep.subr.bf16.mxu0 %v2210
      %2269 = vmatpush1.bf16.msra.mxu0 %v2209
      %2270 = vmatprep.subr.bf16.mxu0 %v2250
      %2271 = vmatpush1.bf16.msra.mxu0 %v2247
      %2272 = vmatprep.subr.bf16.mxu0 0
      %2273 = vmatpush1.bf16.msra.mxu0 0
      %2274 = vmatprep.subr.bf16.mxu0 0
      %2275 = vmatpush1.bf16.msra.mxu0 0
      %2276 = vmatprep.subr.bf16.mxu0 0
      %2277 = vmatpush1.bf16.msra.mxu0 0
      %2278 = vmatprep.subr.bf16.mxu0 0
      %2279 = vmatpush1.bf16.msra.mxu0 0
      %2280 = vmatprep.subr.bf16.mxu0 0
      %2281 = vmatpush1.bf16.msra.mxu0 0
      %2282 = vmatprep.subr.bf16.mxu0 0
      %2283 = vmatpush1.bf16.msra.mxu0 0
      %2284 = vmatprep.subr.bf16.mxu0 0
      %2285 = vmatpush1.bf16.msra.mxu0 0
      %2286 = vmatprep.subr.bf16.mxu0 0
      %2287 = vmatpush1.bf16.msra.mxu0 0
      %2288 = vmatprep.subr.bf16.mxu0 0
      %2289 = vmatpush1.bf16.msra.mxu0 0
      %2290 = vmatprep.mubr.bf16.mxu0 0
      %2291 = vmatmul.mubr.bf16.gmra.mrb[0].mxu0 %v2241
      %v2292 = vpop.f32.mrb[0].mxu0
      %v2293 = vadd.f32 0.0, %v2292
      %v2294 = vpop.f32.mrb[0].mxu0
      %v2295 = vadd.f32 0.0, %v2294
      %v2296 = vpop.f32.mrb[0].mxu0
      %v2297 = vadd.f32 0.0, %v2296
      %v2298 = vpop.f32.mrb[0].mxu0
      %v2299 = vadd.f32 0.0, %v2298
      %2300 = vmatprep.mubr.bf16.mxu0 0
      %2301 = vmatmul.mubr.bf16.gmra.mrb[0].mxu0 %v2244
      %v2302 = vpop.f32.mrb[0].mxu0
      %v2303 = vadd.f32 0.0, %v2302
      %v2304 = vpop.f32.mrb[0].mxu0
      %v2305 = vadd.f32 0.0, %v2304
      %v2306 = vpop.f32.mrb[0].mxu0
      %v2307 = vadd.f32 0.0, %v2306
      %v2308 = vpop.f32.mrb[0].mxu0
      %v2309 = vadd.f32 0.0, %v2308
      %2310 = vdwg.mxu0
      %2311 = vmatprep.subr.bf16.mxu0 %v1539
      %2312 = vmatpush1.bf16.msra.mxu0 %v1536
      %2313 = vmatprep.subr.bf16.mxu0 %v1571
      %2314 = vmatpush1.bf16.msra.mxu0 %v1568
      %2315 = vmatprep.subr.bf16.mxu0 %v1603
      %2316 = vmatpush1.bf16.msra.mxu0 %v1600
      %2317 = vmatprep.subr.bf16.mxu0 %v1635
      %2318 = vmatpush1.bf16.msra.mxu0 %v1632
      %2319 = vmatprep.subr.bf16.mxu0 %v2208
      %2320 = vmatpush1.bf16.msra.mxu0 %v2207
      %2321 = vmatprep.subr.bf16.mxu0 %v2212
      %2322 = vmatpush1.bf16.msra.mxu0 %v2211
      %2323 = vmatprep.subr.bf16.mxu0 %v2256
      %2324 = vmatpush1.bf16.msra.mxu0 %v2253
      %2325 = vmatprep.subr.bf16.mxu0 0
      %2326 = vmatpush1.bf16.msra.mxu0 0
      %2327 = vmatprep.subr.bf16.mxu0 0
      %2328 = vmatpush1.bf16.msra.mxu0 0
      %2329 = vmatprep.subr.bf16.mxu0 0
      %2330 = vmatpush1.bf16.msra.mxu0 0
      %2331 = vmatprep.subr.bf16.mxu0 0
      %2332 = vmatpush1.bf16.msra.mxu0 0
      %2333 = vmatprep.subr.bf16.mxu0 0
      %2334 = vmatpush1.bf16.msra.mxu0 0
      %2335 = vmatprep.subr.bf16.mxu0 0
      %2336 = vmatpush1.bf16.msra.mxu0 0
      %2337 = vmatprep.subr.bf16.mxu0 0
      %2338 = vmatpush1.bf16.msra.mxu0 0
      %2339 = vmatprep.subr.bf16.mxu0 0
      %2340 = vmatpush1.bf16.msra.mxu0 0
      %2341 = vmatprep.subr.bf16.mxu0 0
      %2342 = vmatpush1.bf16.msra.mxu0 0
      %2343 = vmatprep.mubr.bf16.mxu0 0
      %2344 = vmatmul.mubr.bf16.gmra.mrb[0].mxu0 %v2241
      %v2345 = vpop.f32.mrb[0].mxu0
      %v2346 = vadd.f32 0.0, %v2345
      %v2347 = vpop.f32.mrb[0].mxu0
      %v2348 = vadd.f32 0.0, %v2347
      %v2349 = vpop.f32.mrb[0].mxu0
      %v2350 = vadd.f32 0.0, %v2349
      %v2351 = vpop.f32.mrb[0].mxu0
      %v2352 = vadd.f32 0.0, %v2351
      %2353 = vmatprep.mubr.bf16.mxu0 0
      %2354 = vmatmul.mubr.bf16.gmra.mrb[0].mxu0 %v2244
      %v2355 = vpop.f32.mrb[0].mxu0
      %v2356 = vadd.f32 0.0, %v2355
      %v2357 = vpop.f32.mrb[0].mxu0
      %v2358 = vadd.f32 0.0, %v2357
      %v2359 = vpop.f32.mrb[0].mxu0
      %v2360 = vadd.f32 0.0, %v2359
      %v2361 = vpop.f32.mrb[0].mxu0
      %v2362 = vadd.f32 0.0, %v2361
      %2363 = vdwg.mxu0
      %v2364 = vadd.f32 %v2293, %v2297
      %v2365 = vadd.f32 %v2364, %v2303
      %v2366 = vadd.f32 %v2365, %v2307
      %v2367 = vrot.slane %v2366, 4
      %v2368 = vadd.f32 %v2366, %v2367
      %v2369 = vrot.slane %v2368, 2
      %v2370 = vadd.f32 %v2368, %v2369
      %v2371 = vrot.slane %v2370, 1
      %v2372 = vadd.f32 %v2370, %v2371
      %v2373 = vadd.f32 %v2295, %v2299
      %v2374 = vadd.f32 %v2373, %v2305
      %v2375 = vadd.f32 %v2374, %v2309
      %v2376 = vrot.slane %v2375, 4
      %v2377 = vadd.f32 %v2375, %v2376
      %v2378 = vrot.slane %v2377, 2
      %v2379 = vadd.f32 %v2377, %v2378
      %v2380 = vrot.slane %v2379, 1
      %v2381 = vadd.f32 %v2379, %v2380
      %v2382 = vadd.f32 %v2346, %v2350
      %v2383 = vadd.f32 %v2382, %v2356
      %v2384 = vadd.f32 %v2383, %v2360
      %v2385 = vrot.slane %v2384, 4
      %v2386 = vadd.f32 %v2384, %v2385
      %v2387 = vrot.slane %v2386, 2
      %v2388 = vadd.f32 %v2386, %v2387
      %v2389 = vrot.slane %v2388, 1
      %v2390 = vadd.f32 %v2388, %v2389
      %v2391 = vadd.f32 %v2348, %v2352
      %v2392 = vadd.f32 %v2391, %v2358
      %v2393 = vadd.f32 %v2392, %v2362
      %v2394 = vrot.slane %v2393, 4
      %v2395 = vadd.f32 %v2393, %v2394
      %v2396 = vrot.slane %v2395, 2
      %v2397 = vadd.f32 %v2395, %v2396
      %v2398 = vrot.slane %v2397, 1
      %v2399 = vadd.f32 %v2397, %v2398
      %v2400 = vrcp.pop 32.0
      %v2401 = vmul.f32 %v2372, %v2400
      %v2402 = vmul.f32 %v2381, %v2400
      %v2403 = vmul.f32 %v2390, %v2400
      %v2404 = vmul.f32 %v2399, %v2400
      %v2405 = vsub.f32 %v2293, %v2401
      %v2406 = vsub.f32 %v2295, %v2402
      %v2407 = vsub.f32 %v2346, %v2403
      %v2408 = vsub.f32 %v2348, %v2404
      %v2409 = vsub.f32 %v2297, %v2401
      %v2410 = vsub.f32 %v2299, %v2402
      %v2411 = vsub.f32 %v2350, %v2403
      %v2412 = vsub.f32 %v2352, %v2404
      %v2413 = vsub.f32 %v2303, %v2401
      %v2414 = vsub.f32 %v2305, %v2402
      %v2415 = vsub.f32 %v2356, %v2403
      %v2416 = vsub.f32 %v2358, %v2404
      %v2417 = vsub.f32 %v2307, %v2401
      %v2418 = vsub.f32 %v2309, %v2402
      %v2419 = vsub.f32 %v2360, %v2403
      %v2420 = vsub.f32 %v2362, %v2404
      %v2421 = vmul.f32 %v2405, %v2405
      %v2422 = vmul.f32 %v2406, %v2406
      %v2423 = vmul.f32 %v2407, %v2407
      %v2424 = vmul.f32 %v2408, %v2408
      %v2425 = vmul.f32 %v2409, %v2409
      %v2426 = vmul.f32 %v2410, %v2410
      %v2427 = vmul.f32 %v2411, %v2411
      %v2428 = vmul.f32 %v2412, %v2412
      %v2429 = vmul.f32 %v2413, %v2413
      %v2430 = vmul.f32 %v2414, %v2414
      %v2431 = vmul.f32 %v2415, %v2415
      %v2432 = vmul.f32 %v2416, %v2416
      %v2433 = vmul.f32 %v2417, %v2417
      %v2434 = vmul.f32 %v2418, %v2418
      %v2435 = vmul.f32 %v2419, %v2419
      %v2436 = vmul.f32 %v2420, %v2420
      %v2437 = vadd.f32 %v2421, %v2425
      %v2438 = vadd.f32 %v2437, %v2429
      %v2439 = vadd.f32 %v2438, %v2433
      %v2440 = vrot.slane %v2439, 4
      %v2441 = vadd.f32 %v2439, %v2440
      %v2442 = vrot.slane %v2441, 2
      %v2443 = vadd.f32 %v2441, %v2442
      %v2444 = vrot.slane %v2443, 1
      %v2445 = vadd.f32 %v2443, %v2444
      %v2446 = vadd.f32 %v2422, %v2426
      %v2447 = vadd.f32 %v2446, %v2430
      %v2448 = vadd.f32 %v2447, %v2434
      %v2449 = vrot.slane %v2448, 4
      %v2450 = vadd.f32 %v2448, %v2449
      %v2451 = vrot.slane %v2450, 2
      %v2452 = vadd.f32 %v2450, %v2451
      %v2453 = vrot.slane %v2452, 1
      %v2454 = vadd.f32 %v2452, %v2453
      %v2455 = vadd.f32 %v2423, %v2427
      %v2456 = vadd.f32 %v2455, %v2431
      %v2457 = vadd.f32 %v2456, %v2435
      %v2458 = vrot.slane %v2457, 4
      %v2459 = vadd.f32 %v2457, %v2458
      %v2460 = vrot.slane %v2459, 2
      %v2461 = vadd.f32 %v2459, %v2460
      %v2462 = vrot.slane %v2461, 1
      %v2463 = vadd.f32 %v2461, %v2462
      %v2464 = vadd.f32 %v2424, %v2428
      %v2465 = vadd.f32 %v2464, %v2432
      %v2466 = vadd.f32 %v2465, %v2436
      %v2467 = vrot.slane %v2466, 4
      %v2468 = vadd.f32 %v2466, %v2467
      %v2469 = vrot.slane %v2468, 2
      %v2470 = vadd.f32 %v2468, %v2469
      %v2471 = vrot.slane %v2470, 1
      %v2472 = vadd.f32 %v2470, %v2471
      %v2473 = vmul.f32 %v2445, %v2400
      %v2474 = vmul.f32 %v2454, %v2400
      %v2475 = vmul.f32 %v2463, %v2400
      %v2476 = vmul.f32 %v2472, %v2400
      %v2477 = vadd.f32 %v2473, 1e-06
      %v2478 = vadd.f32 %v2474, 1e-06
      %v2479 = vadd.f32 %v2475, 1e-06
      %v2480 = vadd.f32 %v2476, 1e-06
      %v2481 = vrsqrt.pop %v2477
      %v2482 = vrsqrt.pop %v2478
      %v2483 = vrsqrt.pop %v2479
      %v2484 = vrsqrt.pop %v2480
      %v2485 = vmul.f32 %v2405, %v2481
      %v2486 = vmul.f32 %v2406, %v2482
      %v2487 = vmul.f32 %v2407, %v2483
      %v2488 = vmul.f32 %v2408, %v2484
      %v2489 = vmul.f32 %v2409, %v2481
      %v2490 = vmul.f32 %v2410, %v2482
      %v2491 = vmul.f32 %v2411, %v2483
      %v2492 = vmul.f32 %v2412, %v2484
      %v2493 = vmul.f32 %v2413, %v2481
      %v2494 = vmul.f32 %v2414, %v2482
      %v2495 = vmul.f32 %v2415, %v2483
      %v2496 = vmul.f32 %v2416, %v2484
      %v2497 = vmul.f32 %v2417, %v2481
      %v2498 = vmul.f32 %v2418, %v2482
      %v2499 = vmul.f32 %v2419, %v2483
      %v2500 = vmul.f32 %v2420, %v2484
      %v2501 = vld [vmem:[%s3] sm:$0xff]
      %v2502 = vld [vmem:[%s3 + $0x8] sm:$0xff]
      %v2503 = vld [vmem:[%s3 + $0x10] sm:$0xff]
      %v2504 = vld [vmem:[%s3 + $0x18] sm:$0xff]
      %2506 = vset.pattern.permute.xlu0 0
      %2507 = vperm.xlu0 %2506, %v2501
      %v2508 = vpop.permute.xlu0 %2507
      %2511 = vset.pattern.permute.xlu0 0
      %2512 = vperm.xlu0 %2511, %v2502
      %v2513 = vpop.permute.xlu0 %2512
      %2516 = vset.pattern.permute.xlu0 0
      %2517 = vperm.xlu0 %2516, %v2503
      %v2518 = vpop.permute.xlu0 %2517
      %2521 = vset.pattern.permute.xlu0 0
      %2522 = vperm.xlu0 %2521, %v2504
      %v2523 = vpop.permute.xlu0 %2522
      %v2525 = vmul.f32 %v2485, %v2508
      %v2526 = vmul.f32 %v2486, %v2508
      %v2527 = vmul.f32 %v2487, %v2508
      %v2528 = vmul.f32 %v2488, %v2508
      %v2529 = vmul.f32 %v2489, %v2513
      %v2530 = vmul.f32 %v2490, %v2513
      %v2531 = vmul.f32 %v2491, %v2513
      %v2532 = vmul.f32 %v2492, %v2513
      %v2533 = vmul.f32 %v2493, %v2518
      %v2534 = vmul.f32 %v2494, %v2518
      %v2535 = vmul.f32 %v2495, %v2518
      %v2536 = vmul.f32 %v2496, %v2518
      %v2537 = vmul.f32 %v2497, %v2523
      %v2538 = vmul.f32 %v2498, %v2523
      %v2539 = vmul.f32 %v2499, %v2523
      %v2540 = vmul.f32 %v2500, %v2523
      %v2541 = vld [vmem:[%s4] sm:$0xff]
      %v2542 = vld [vmem:[%s4 + $0x8] sm:$0xff]
      %v2543 = vld [vmem:[%s4 + $0x10] sm:$0xff]
      %v2544 = vld [vmem:[%s4 + $0x18] sm:$0xff]
      %2546 = vset.pattern.permute.xlu0 0
      %2547 = vperm.xlu0 %2546, %v2541
      %v2548 = vpop.permute.xlu0 %2547
      %2551 = vset.pattern.permute.xlu0 0
      %2552 = vperm.xlu0 %2551, %v2542
      %v2553 = vpop.permute.xlu0 %2552
      %2556 = vset.pattern.permute.xlu0 0
      %2557 = vperm.xlu0 %2556, %v2543
      %v2558 = vpop.permute.xlu0 %2557
      %2561 = vset.pattern.permute.xlu0 0
      %2562 = vperm.xlu0 %2561, %v2544
      %v2563 = vpop.permute.xlu0 %2562
      %v2565 = vadd.f32 %v2525, %v2548
      %v2566 = vadd.f32 %v2526, %v2548
      %v2567 = vadd.f32 %v2527, %v2548
      %v2568 = vadd.f32 %v2528, %v2548
      %v2569 = vadd.f32 %v2529, %v2553
      %v2570 = vadd.f32 %v2530, %v2553
      %v2571 = vadd.f32 %v2531, %v2553
      %v2572 = vadd.f32 %v2532, %v2553
      %v2573 = vadd.f32 %v2533, %v2558
      %v2574 = vadd.f32 %v2534, %v2558
      %v2575 = vadd.f32 %v2535, %v2558
      %v2576 = vadd.f32 %v2536, %v2558
      %v2577 = vadd.f32 %v2537, %v2563
      %v2578 = vadd.f32 %v2538, %v2563
      %v2579 = vadd.f32 %v2539, %v2563
      %v2580 = vadd.f32 %v2540, %v2563
      %2581 = vst [vmem:[%s253] sm:$0xff] %v2565
      %2582 = vst [vmem:[%s253 + $0x8] sm:$0xff] %v2566
      %2583 = vst [vmem:[%s253 + $0x10] sm:$0xff] %v2567
      %2584 = vst [vmem:[%s253 + $0x18] sm:$0xff] %v2568
      %2585 = vst [vmem:[%s253 + $0x20] sm:$0xff] %v2569
      %2586 = vst [vmem:[%s253 + $0x28] sm:$0xff] %v2570
      %2587 = vst [vmem:[%s253 + $0x30] sm:$0xff] %v2571
      %2588 = vst [vmem:[%s253 + $0x38] sm:$0xff] %v2572
      %2589 = vst [vmem:[%s253 + $0x40] sm:$0xff] %v2573
      %2590 = vst [vmem:[%s253 + $0x48] sm:$0xff] %v2574
      %2591 = vst [vmem:[%s253 + $0x50] sm:$0xff] %v2575
      %2592 = vst [vmem:[%s253 + $0x58] sm:$0xff] %v2576
      %2593 = vst [vmem:[%s253 + $0x60] sm:$0xff] %v2577
      %2594 = vst [vmem:[%s253 + $0x68] sm:$0xff] %v2578
      %2595 = vst [vmem:[%s253 + $0x70] sm:$0xff] %v2579
      %2596 = vst [vmem:[%s253 + $0x78] sm:$0xff] %v2580
      %s2597 = smul.u32 4, %s21
      %p2598 = scmp.lt.s32.totalorder %s20, 1
      %s2599 = scalar_select %p2598, %s20, 1
      %p2600 = scmp.lt.s32.totalorder %s2597, 3
      %s2601 = scalar_select %p2600, %s2597, 3
      %s2602 = smul.addr %s2599, 16
      %s2603 = sadd.s32 %s2601, %s2602
      %s2604 = smul.addr %s2603, 8
      %s2605 = scalar_lea.vmem %s5, %s2604
      // Predicated region
      $region41: #{stem_layer_forward.1} parent=39 // pred_check
        %p2606 = pneg %p160
      $region42: #{stem_layer_forward.1} parent=39 // pred_check_branch
        %2608 = sbr.rel (%p2606) target = $region44
      $region43: #{stem_layer_forward.1} parent=39 // pred_region
        %s2609 = smul.u32 4, %s21
      $region44: #{stem_layer_forward.1} parent=39 // pred_fallthru
        _
    $region40: #{stem_layer_forward.1} parent=5 // pred_fallthru
      _
    %p2610 = scmp.le.s32.totalorder 2, %s11
    // Predicated region
    $region45: #{stem_layer_forward.1} parent=5 // pred_check
      %p2611 = pneg %p2610
    $region46: #{stem_layer_forward.1} parent=5 // pred_check_branch
      %2613 = sbr.rel (%p2611) target = $region48
    $region47: #{stem_layer_forward.1} parent=5 // pred_region
      %s2614 = ssub.s32 %s11, 2
      // Predicated region
      $region49: #{stem_layer_forward.1} parent=47 // pred_check
        %p2615 = pneg %p166
      $region50: #{stem_layer_forward.1} parent=47 // pred_check_branch
        %2617 = sbr.rel (%p2615) target = $region52
      $region51: #{stem_layer_forward.1} parent=47 // pred_region
        %s2618 = smul.u32 4, %s23
        %p2619 = scmp.lt.s32.totalorder %s22, 1
        %s2620 = scalar_select %p2619, %s22, 1
        %p2621 = scmp.lt.s32.totalorder %s2618, 3
        %s2622 = scalar_select %p2621, %s2618, 3
        %s2623 = smul.addr %s2620, 16
        %s2624 = sadd.s32 %s2622, %s2623
        %s2625 = smul.addr %s2624, 8
        %s2626 = scalar_lea.vmem %s5, %s2625
      $region52: #{stem_layer_forward.1} parent=47 // pred_fallthru
        _
    $region48: #{stem_layer_forward.1} parent=5 // pred_fallthru
      _
  $region6: #{stem_layer_forward.1} parent=0 // loop_footer
    %s15 = sadd.s32 1, %s11
  $region7: #{stem_layer_forward.1} parent=0 // loop_footer_branch
    %10 = sbr.rel target = $region3
  $region8: #{stem_layer_forward.1} parent=0 // loop_exit
    _

</llo_original>
